<compile_context>
chip_gen: v7x
topology: tpu7x:2x2x1
jax: 0.10.0
libtpu: 0.0.40
codegen_flags: <defaults>
</compile_context>

<pallas_src>
import jax
import jax.numpy as jnp
from jax.experimental import pallas as pl
from jax.experimental.pallas import tpu as pltpu

NEG_SLOPE = 0.2      # PyG GATConv LeakyReLU negative slope
LN_EPS = 1e-5        # torch.nn.LayerNorm default eps
NEG_INF = -1e30


def _bf16(v):
    return v.astype(jnp.bfloat16)


def _gat_block(x, adj, w_ref, mdst_ref, msrc_ref, b_ref, heads, dim):
    """GATConv(concat=False, eval mode) with all heads batched."""
    n = x.shape[0]
    # Feature projection for every head in one MXU pass: (N, H*D).
    xp = jnp.dot(_bf16(x), w_ref[...], preferred_element_type=jnp.float32)
    xp_b = _bf16(xp)
    # Per-head attention logits.  mdst_ref is (H*D, H) block-diagonal,
    # msrc_ref is (H, H*D) block-diagonal; the source scores come out already
    # in (H, N) row layout, so no in-kernel transposes are needed.
    a_dst = jnp.dot(xp_b, mdst_ref[...],
                    preferred_element_type=jnp.float32)                  # (N, H)
    a_src = jax.lax.dot_general(msrc_ref[...], xp_b,
                                (((1,), (1,)), ((), ())),
                                preferred_element_type=jnp.float32)      # (H, N)
    # Stacked logits: rows [h*N:(h+1)*N] hold head h -> one batched softmax.
    e = jnp.concatenate(
        [a_dst[:, h:h + 1] + a_src[h:h + 1, :] for h in range(heads)], axis=0)
    e = jnp.maximum(e, NEG_SLOPE * e)                                    # LeakyReLU
    adj_t = adj if heads == 1 else jnp.concatenate([adj] * heads, axis=0)
    e = jnp.where(adj_t > 0, e, NEG_INF)                                 # single masked select
    e = e - jnp.max(e, axis=-1, keepdims=True)                           # stable softmax
    p = jnp.exp(e)
    denom = jnp.sum(p, axis=-1, keepdims=True)
    # EUP reciprocal; fold the 1/heads head-average into the same multiply.
    p = p * (pl.reciprocal(denom, approx=True) * (1.0 / heads))
    # TODO(synk): attention dropout (p=0.05) is a no-op in eval mode.
    # One (H*N, N) x (N, H*D) MXU pass; head-h output is diagonal block h.
    tall = jnp.dot(_bf16(p), xp_b, preferred_element_type=jnp.float32)   # (H*N, H*D)
    out = tall[0:n, 0:dim]
    for h in range(1, heads):
        out = out + tall[h * n:(h + 1) * n, h * dim:(h + 1) * dim]
    return out + b_ref[...]


def _layer_norm(v, gamma, beta):
    mu = jnp.mean(v, axis=-1, keepdims=True)
    var = jnp.mean(jnp.square(v - mu), axis=-1, keepdims=True)
    return (v - mu) * jax.lax.rsqrt(var + LN_EPS) * gamma + beta


def _elu(v):
    return jnp.where(v > 0, v, jnp.exp(v) - 1.0)


def make_fused_kernel(res_meta, fin_meta):
    """res_meta: tuple of (heads, dim, has_proj); fin_meta: (heads, dim)."""

    def kernel(*refs):
        refs = list(refs)
        pos = 0

        def take(k):
            nonlocal pos
            vals = refs[pos:pos + k]
            pos += k
            return vals

        x_ref, adj_ref = take(2)
        x = x_ref[...]
        adj = adj_ref[...]

        for heads, dim, has_proj in res_meta:
            w, mdst, msrc, b, gamma, beta = take(6)
            if has_proj:
                rw, rb = take(2)
                res = jnp.dot(_bf16(x), rw[...],
                              preferred_element_type=jnp.float32) + rb[...]
            else:
                res = x                      # identity residual: no matmul, no eye
            out = _gat_block(x, adj, w, mdst, msrc, b, heads, dim)
            out = _layer_norm(out, gamma[...], beta[...])
            # TODO(synk): feature dropout (p=0.05) is a no-op in eval mode.
            x = out + res

        # Final GATConv (heads=1, concat=False), no norm / residual.
        w, mdst, msrc, b = take(4)
        x = _gat_block(x, adj, w, mdst, msrc, b, fin_meta[0], fin_meta[1])

        # MLP head: Linear -> ELU -> Linear -> ELU -> Linear -> Sigmoid.
        w1, b1, w2, b2, w3, b3 = take(6)
        (o_ref,) = take(1)
        h = jnp.dot(_bf16(x), w1[...], preferred_element_type=jnp.float32) + b1[...]
        h = _elu(h)
        h = jnp.dot(_bf16(h), w2[...], preferred_element_type=jnp.float32) + b2[...]
        h = _elu(h)
        h = jnp.dot(_bf16(h), w3[...], preferred_element_type=jnp.float32) + b3[...]
        o_ref[...] = 1.0 / (1.0 + jnp.exp(-h))          # exact sigmoid (keeps [0,1])

    return kernel


def _block_att(att):
    """(H, D) per-head attention vector -> (H, H*D) block-diagonal matrix."""
    h, d = att.shape
    eye = jnp.eye(h, dtype=att.dtype)
    return (eye[:, :, None] * att[:, None, :]).reshape(h, h * d)


def deep_gat_forward(x, adj, params):
    n = x.shape[0]
    res_meta = tuple((l["heads"], l["dim"], "rw" in l) for l in params["res_layers"])
    fin = params["final"]
    fin_meta = (fin["heads"], fin["dim"])

    inputs = [x, _bf16(adj)]
    for l in params["res_layers"]:
        inputs += [_bf16(l["w"]),
                   _bf16(_block_att(l["att_dst"]).T),     # (H*D, H)
                   _bf16(_block_att(l["att_src"])),       # (H, H*D)
                   l["bias"], l["gamma"], l["beta"]]
        if "rw" in l:
            inputs += [_bf16(l["rw"]), l["rb"]]
    inputs += [_bf16(fin["w"]),
               _bf16(_block_att(fin["att_dst"]).T),
               _bf16(_block_att(fin["att_src"])),
               fin["bias"]]
    m = params["mlp"]
    inputs += [_bf16(m["w1"]), m["b1"], _bf16(m["w2"]), m["b2"], _bf16(m["w3"]), m["b3"]]

    out_dim = m["w3"].shape[1]
    kernel = make_fused_kernel(res_meta, fin_meta)
    out = pl.pallas_call(
        kernel,
        out_shape=jax.ShapeDtypeStruct((n, out_dim), jnp.float32),
        in_specs=[pl.BlockSpec(memory_space=pltpu.MemorySpace.VMEM)
                  for _ in range(len(inputs))],
        out_specs=pl.BlockSpec(memory_space=pltpu.MemorySpace.VMEM),
    )(*inputs)
    return jnp.squeeze(out)


def make_params(key, in_features, hidden_dims, heads_per_layer,
                out_features, mlp_dims):
    assert len(hidden_dims) == len(heads_per_layer)
    params = {"res_layers": [], "final": None, "mlp": None}
    cur = in_features
    for dim, h in zip(hidden_dims, heads_per_layer):
        key, k0, k1, k2, k3, k4, k5 = jax.random.split(key, 7)
        layer = {
            "heads": h,
            "dim": dim,
            "w": jax.random.normal(k0, (cur, h * dim), jnp.float32) * 0.1,  # lin (no bias)
            "att_src": jax.random.normal(k1, (h, dim), jnp.float32) * 0.1,
            "att_dst": jax.random.normal(k2, (h, dim), jnp.float32) * 0.1,
            "bias": jax.random.normal(k3, (1, dim), jnp.float32) * 0.01,
            "gamma": jnp.ones((1, dim), jnp.float32),
            "beta": jnp.zeros((1, dim), jnp.float32),
        }
        if cur != dim:                       # projection residual only when needed
            layer["rw"] = jax.random.normal(k4, (cur, dim), jnp.float32) * 0.1
            layer["rb"] = jax.random.normal(k5, (1, dim), jnp.float32) * 0.01
        params["res_layers"].append(layer)
        cur = dim

    key, k0, k1, k2, k3 = jax.random.split(key, 5)
    params["final"] = {
        "heads": 1,
        "dim": out_features,
        "w": jax.random.normal(k0, (cur, out_features), jnp.float32) * 0.1,
        "att_src": jax.random.normal(k1, (1, out_features), jnp.float32) * 0.1,
        "att_dst": jax.random.normal(k2, (1, out_features), jnp.float32) * 0.1,
        "bias": jax.random.normal(k3, (1, out_features), jnp.float32) * 0.01,
    }

    key, k0, k1, k2, k3, k4, k5 = jax.random.split(key, 7)
    params["mlp"] = {
        "w1": jax.random.normal(k0, (out_features, mlp_dims[0]), jnp.float32) * 0.1,
        "b1": jax.random.normal(k1, (1, mlp_dims[0]), jnp.float32) * 0.01,
        "w2": jax.random.normal(k2, (mlp_dims[0], mlp_dims[1]), jnp.float32) * 0.1,
        "b2": jax.random.normal(k3, (1, mlp_dims[1]), jnp.float32) * 0.01,
        "w3": jax.random.normal(k4, (mlp_dims[1], mlp_dims[2]), jnp.float32) * 0.1,
        "b3": jax.random.normal(k5, (1, mlp_dims[2]), jnp.float32) * 0.01,
    }
    return params


if __name__ == "__main__":
    key = jax.random.PRNGKey(0)

    N = 16                      # number of graph nodes
    in_features = 8
    hidden_dims = [32, 32]
    heads_per_layer = [4, 4]
    out_features = 16
    mlp_dims = [32, 16, 1]

    kx, kp = jax.random.split(key)
    x = jax.random.normal(kx, (N, in_features), jnp.float32)

    # deterministic edge_index (2, E): ring + skip-3 connections, both directions
    src, dst = [], []
    for i in range(N):
        for d in (1, 3):
            j = (i + d) % N
            src += [i, j]
            dst += [j, i]
    edge_index = jnp.array([src, dst], dtype=jnp.int32)   # (2, 64)

    # dense adjacency mask: adj[dst, src] = 1, plus self-loops (PyG default)
    adj = jnp.zeros((N, N), jnp.float32).at[edge_index[1], edge_index[0]].set(1.0)
    adj = jnp.maximum(adj, jnp.eye(N, dtype=jnp.float32))

    params = make_params(kp, in_features, hidden_dims, heads_per_layer,
                         out_features, mlp_dims)

    out = deep_gat_forward(x, adj, params)
    out = jax.block_until_ready(out)
    assert out.shape == (N,)
    assert bool(jnp.all(jnp.isfinite(out)))
    assert bool(jnp.all((out >= 0.0) & (out <= 1.0)))   # sigmoid output range
    print("KERNEL_OK")
</pallas_src>

<mosaic_0001>
module attributes {stable_mosaic.version = 11 : i64} {
  func.func @kernel(%arg0: memref<16x8xf32, #tpu.memory_space<vmem>>, %arg1: memref<16x16xbf16, #tpu.memory_space<vmem>>, %arg2: memref<8x128xbf16, #tpu.memory_space<vmem>>, %arg3: memref<128x4xbf16, #tpu.memory_space<vmem>>, %arg4: memref<4x128xbf16, #tpu.memory_space<vmem>>, %arg5: memref<1x32xf32, #tpu.memory_space<vmem>>, %arg6: memref<1x32xf32, #tpu.memory_space<vmem>>, %arg7: memref<1x32xf32, #tpu.memory_space<vmem>>, %arg8: memref<8x32xbf16, #tpu.memory_space<vmem>>, %arg9: memref<1x32xf32, #tpu.memory_space<vmem>>, %arg10: memref<32x128xbf16, #tpu.memory_space<vmem>>, %arg11: memref<128x4xbf16, #tpu.memory_space<vmem>>, %arg12: memref<4x128xbf16, #tpu.memory_space<vmem>>, %arg13: memref<1x32xf32, #tpu.memory_space<vmem>>, %arg14: memref<1x32xf32, #tpu.memory_space<vmem>>, %arg15: memref<1x32xf32, #tpu.memory_space<vmem>>, %arg16: memref<32x16xbf16, #tpu.memory_space<vmem>>, %arg17: memref<16x1xbf16, #tpu.memory_space<vmem>>, %arg18: memref<1x16xbf16, #tpu.memory_space<vmem>>, %arg19: memref<1x16xf32, #tpu.memory_space<vmem>>, %arg20: memref<16x32xbf16, #tpu.memory_space<vmem>>, %arg21: memref<1x32xf32, #tpu.memory_space<vmem>>, %arg22: memref<32x16xbf16, #tpu.memory_space<vmem>>, %arg23: memref<1x16xf32, #tpu.memory_space<vmem>>, %arg24: memref<16x1xbf16, #tpu.memory_space<vmem>>, %arg25: memref<1x1xf32, #tpu.memory_space<vmem>>, %arg26: memref<16x1xf32, #tpu.memory_space<vmem>>) attributes {dimension_semantics = [], scalar_prefetch = 0 : i64, scratch_operands = 0 : i64, tpu.core_type = #tpu.core_type<tc>} {
    %c0 = arith.constant 0 : index
    %c0_0 = arith.constant 0 : index
    %0 = vector.load %arg0[%c0, %c0_0] : memref<16x8xf32, #tpu.memory_space<vmem>>, vector<16x8xf32>
    %c0_1 = arith.constant 0 : index
    %c0_2 = arith.constant 0 : index
    %1 = vector.load %arg1[%c0_1, %c0_2] : memref<16x16xbf16, #tpu.memory_space<vmem>>, vector<16x16xbf16>
    %2 = arith.truncf %0 : vector<16x8xf32> to vector<16x8xbf16>
    %c0_3 = arith.constant 0 : index
    %c0_4 = arith.constant 0 : index
    %3 = vector.load %arg8[%c0_3, %c0_4] : memref<8x32xbf16, #tpu.memory_space<vmem>>, vector<8x32xbf16>
    %cst = arith.constant dense<0.000000e+00> : vector<16x32xf32>
    %4 = tpu.matmul %2, %3, %cst {dimension_numbers = #tpu.dot_dimension_numbers<[1], [0], [0], [1], [0, 0, 1, 1], [], []>} : vector<16x8xbf16>, vector<8x32xbf16>, vector<16x32xf32> -> vector<16x32xf32>
    %c0_5 = arith.constant 0 : index
    %c0_6 = arith.constant 0 : index
    %5 = vector.load %arg9[%c0_5, %c0_6] : memref<1x32xf32, #tpu.memory_space<vmem>>, vector<1x32xf32>
    %6 = vector.broadcast %5 : vector<1x32xf32> to vector<16x32xf32>
    %7 = arith.addf %4, %6 : vector<16x32xf32>
    %8 = arith.truncf %0 : vector<16x8xf32> to vector<16x8xbf16>
    %c0_7 = arith.constant 0 : index
    %c0_8 = arith.constant 0 : index
    %9 = vector.load %arg2[%c0_7, %c0_8] : memref<8x128xbf16, #tpu.memory_space<vmem>>, vector<8x128xbf16>
    %cst_9 = arith.constant dense<0.000000e+00> : vector<16x128xf32>
    %10 = tpu.matmul %8, %9, %cst_9 {dimension_numbers = #tpu.dot_dimension_numbers<[1], [0], [0], [1], [0, 0, 1, 1], [], []>} : vector<16x8xbf16>, vector<8x128xbf16>, vector<16x128xf32> -> vector<16x128xf32>
    %11 = arith.truncf %10 : vector<16x128xf32> to vector<16x128xbf16>
    %c0_10 = arith.constant 0 : index
    %c0_11 = arith.constant 0 : index
    %12 = vector.load %arg3[%c0_10, %c0_11] : memref<128x4xbf16, #tpu.memory_space<vmem>>, vector<128x4xbf16>
    %cst_12 = arith.constant dense<0.000000e+00> : vector<16x4xf32>
    %13 = tpu.matmul %11, %12, %cst_12 {dimension_numbers = #tpu.dot_dimension_numbers<[1], [0], [0], [1], [0, 0, 1, 1], [], []>} : vector<16x128xbf16>, vector<128x4xbf16>, vector<16x4xf32> -> vector<16x4xf32>
    %c0_13 = arith.constant 0 : index
    %c0_14 = arith.constant 0 : index
    %14 = vector.load %arg4[%c0_13, %c0_14] : memref<4x128xbf16, #tpu.memory_space<vmem>>, vector<4x128xbf16>
    %cst_15 = arith.constant dense<0.000000e+00> : vector<4x16xf32>
    %15 = tpu.matmul %14, %11, %cst_15 {dimension_numbers = #tpu.dot_dimension_numbers<[1], [1], [0], [0], [0, 0, 1, 0], [], []>} : vector<4x128xbf16>, vector<16x128xbf16>, vector<4x16xf32> -> vector<4x16xf32>
    %16 = vector.extract_strided_slice %13 {offsets = [0, 0], sizes = [16, 1], strides = [1, 1]} : vector<16x4xf32> to vector<16x1xf32>
    %17 = vector.extract_strided_slice %15 {offsets = [0, 0], sizes = [1, 16], strides = [1, 1]} : vector<4x16xf32> to vector<1x16xf32>
    %18 = vector.broadcast %16 : vector<16x1xf32> to vector<16x16xf32>
    %19 = vector.broadcast %17 : vector<1x16xf32> to vector<16x16xf32>
    %20 = arith.addf %18, %19 : vector<16x16xf32>
    %21 = vector.extract_strided_slice %13 {offsets = [0, 1], sizes = [16, 1], strides = [1, 1]} : vector<16x4xf32> to vector<16x1xf32>
    %22 = vector.extract_strided_slice %15 {offsets = [1, 0], sizes = [1, 16], strides = [1, 1]} : vector<4x16xf32> to vector<1x16xf32>
    %23 = vector.broadcast %21 : vector<16x1xf32> to vector<16x16xf32>
    %24 = vector.broadcast %22 : vector<1x16xf32> to vector<16x16xf32>
    %25 = arith.addf %23, %24 : vector<16x16xf32>
    %26 = vector.extract_strided_slice %13 {offsets = [0, 2], sizes = [16, 1], strides = [1, 1]} : vector<16x4xf32> to vector<16x1xf32>
    %27 = vector.extract_strided_slice %15 {offsets = [2, 0], sizes = [1, 16], strides = [1, 1]} : vector<4x16xf32> to vector<1x16xf32>
    %28 = vector.broadcast %26 : vector<16x1xf32> to vector<16x16xf32>
    %29 = vector.broadcast %27 : vector<1x16xf32> to vector<16x16xf32>
    %30 = arith.addf %28, %29 : vector<16x16xf32>
    %31 = vector.extract_strided_slice %13 {offsets = [0, 3], sizes = [16, 1], strides = [1, 1]} : vector<16x4xf32> to vector<16x1xf32>
    %32 = vector.extract_strided_slice %15 {offsets = [3, 0], sizes = [1, 16], strides = [1, 1]} : vector<4x16xf32> to vector<1x16xf32>
    %33 = vector.broadcast %31 : vector<16x1xf32> to vector<16x16xf32>
    %34 = vector.broadcast %32 : vector<1x16xf32> to vector<16x16xf32>
    %35 = arith.addf %33, %34 : vector<16x16xf32>
    %36 = tpu.concatenate %20, %25, %30, %35 in 0 : vector<16x16xf32>, vector<16x16xf32>, vector<16x16xf32>, vector<16x16xf32> -> vector<64x16xf32>
    %cst_16 = arith.constant 2.000000e-01 : f32
    %37 = vector.broadcast %cst_16 : f32 to vector<64x16xf32>
    %38 = arith.mulf %37, %36 : vector<64x16xf32>
    %39 = arith.maximumf %36, %38 : vector<64x16xf32>
    %40 = tpu.concatenate %1, %1, %1, %1 in 0 : vector<16x16xbf16>, vector<16x16xbf16>, vector<16x16xbf16>, vector<16x16xbf16> -> vector<64x16xbf16>
    %cst_17 = arith.constant 0.000000e+00 : bf16
    %41 = vector.broadcast %cst_17 : bf16 to vector<64x16xbf16>
    %42 = arith.cmpf ogt, %40, %41 : vector<64x16xbf16>
    %cst_18 = arith.constant -1.000000e+30 : f32
    %43 = vector.broadcast %cst_18 : f32 to vector<64x16xf32>
    %44 = arith.select %42, %39, %43 : vector<64x16xi1>, vector<64x16xf32>
    %cst_19 = arith.constant dense<0xFF800000> : vector<64xf32>
    %45 = vector.multi_reduction <maximumf>, %44, %cst_19 [1] : vector<64x16xf32> to vector<64xf32>
    %46 = vector.shape_cast %45 : vector<64xf32> to vector<64x1xf32>
    %47 = vector.broadcast %46 : vector<64x1xf32> to vector<64x16xf32>
    %48 = arith.subf %44, %47 : vector<64x16xf32>
    %49 = math.exp %48 : vector<64x16xf32>
    %cst_20 = arith.constant dense<0.000000e+00> : vector<64xf32>
    %50 = vector.multi_reduction <add>, %49, %cst_20 [1] : vector<64x16xf32> to vector<64xf32>
    %51 = vector.shape_cast %50 : vector<64xf32> to vector<64x1xf32>
    %52 = tpu.reciprocal %51 {approx = true} : vector<64x1xf32> -> vector<64x1xf32>
    %cst_21 = arith.constant 2.500000e-01 : f32
    %53 = vector.broadcast %cst_21 : f32 to vector<64x1xf32>
    %54 = arith.mulf %52, %53 : vector<64x1xf32>
    %55 = vector.broadcast %54 : vector<64x1xf32> to vector<64x16xf32>
    %56 = arith.mulf %49, %55 : vector<64x16xf32>
    %57 = arith.truncf %56 : vector<64x16xf32> to vector<64x16xbf16>
    %cst_22 = arith.constant dense<0.000000e+00> : vector<64x128xf32>
    %58 = tpu.matmul %57, %11, %cst_22 {dimension_numbers = #tpu.dot_dimension_numbers<[1], [0], [0], [1], [0, 0, 1, 1], [], []>} : vector<64x16xbf16>, vector<16x128xbf16>, vector<64x128xf32> -> vector<64x128xf32>
    %59 = vector.extract_strided_slice %58 {offsets = [0, 0], sizes = [16, 32], strides = [1, 1]} : vector<64x128xf32> to vector<16x32xf32>
    %60 = vector.extract_strided_slice %58 {offsets = [16, 32], sizes = [16, 32], strides = [1, 1]} : vector<64x128xf32> to vector<16x32xf32>
    %61 = arith.addf %59, %60 : vector<16x32xf32>
    %62 = vector.extract_strided_slice %58 {offsets = [32, 64], sizes = [16, 32], strides = [1, 1]} : vector<64x128xf32> to vector<16x32xf32>
    %63 = arith.addf %61, %62 : vector<16x32xf32>
    %64 = vector.extract_strided_slice %58 {offsets = [48, 96], sizes = [16, 32], strides = [1, 1]} : vector<64x128xf32> to vector<16x32xf32>
    %65 = arith.addf %63, %64 : vector<16x32xf32>
    %c0_23 = arith.constant 0 : index
    %c0_24 = arith.constant 0 : index
    %66 = vector.load %arg5[%c0_23, %c0_24] : memref<1x32xf32, #tpu.memory_space<vmem>>, vector<1x32xf32>
    %67 = vector.broadcast %66 : vector<1x32xf32> to vector<16x32xf32>
    %68 = arith.addf %65, %67 : vector<16x32xf32>
    %c0_25 = arith.constant 0 : index
    %c0_26 = arith.constant 0 : index
    %69 = vector.load %arg6[%c0_25, %c0_26] : memref<1x32xf32, #tpu.memory_space<vmem>>, vector<1x32xf32>
    %c0_27 = arith.constant 0 : index
    %c0_28 = arith.constant 0 : index
    %70 = vector.load %arg7[%c0_27, %c0_28] : memref<1x32xf32, #tpu.memory_space<vmem>>, vector<1x32xf32>
    %cst_29 = arith.constant dense<0.000000e+00> : vector<16xf32>
    %71 = vector.multi_reduction <add>, %68, %cst_29 [1] : vector<16x32xf32> to vector<16xf32>
    %72 = vector.shape_cast %71 : vector<16xf32> to vector<16x1xf32>
    %cst_30 = arith.constant 3.200000e+01 : f32
    %73 = vector.broadcast %cst_30 : f32 to vector<16x1xf32>
    %74 = arith.divf %72, %73 : vector<16x1xf32>
    %75 = vector.broadcast %74 : vector<16x1xf32> to vector<16x32xf32>
    %76 = arith.subf %68, %75 : vector<16x32xf32>
    %77 = arith.mulf %76, %76 : vector<16x32xf32>
    %cst_31 = arith.constant dense<0.000000e+00> : vector<16xf32>
    %78 = vector.multi_reduction <add>, %77, %cst_31 [1] : vector<16x32xf32> to vector<16xf32>
    %79 = vector.shape_cast %78 : vector<16xf32> to vector<16x1xf32>
    %cst_32 = arith.constant 3.200000e+01 : f32
    %80 = vector.broadcast %cst_32 : f32 to vector<16x1xf32>
    %81 = arith.divf %79, %80 : vector<16x1xf32>
    %82 = vector.broadcast %74 : vector<16x1xf32> to vector<16x32xf32>
    %83 = arith.subf %68, %82 : vector<16x32xf32>
    %cst_33 = arith.constant 9.99999974E-6 : f32
    %84 = vector.broadcast %cst_33 : f32 to vector<16x1xf32>
    %85 = arith.addf %81, %84 : vector<16x1xf32>
    %86 = math.rsqrt %85 : vector<16x1xf32>
    %87 = vector.broadcast %86 : vector<16x1xf32> to vector<16x32xf32>
    %88 = arith.mulf %83, %87 : vector<16x32xf32>
    %89 = vector.broadcast %69 : vector<1x32xf32> to vector<16x32xf32>
    %90 = arith.mulf %88, %89 : vector<16x32xf32>
    %91 = vector.broadcast %70 : vector<1x32xf32> to vector<16x32xf32>
    %92 = arith.addf %90, %91 : vector<16x32xf32>
    %93 = arith.addf %92, %7 : vector<16x32xf32>
    %94 = arith.truncf %93 : vector<16x32xf32> to vector<16x32xbf16>
    %c0_34 = arith.constant 0 : index
    %c0_35 = arith.constant 0 : index
    %95 = vector.load %arg10[%c0_34, %c0_35] : memref<32x128xbf16, #tpu.memory_space<vmem>>, vector<32x128xbf16>
    %cst_36 = arith.constant dense<0.000000e+00> : vector<16x128xf32>
    %96 = tpu.matmul %94, %95, %cst_36 {dimension_numbers = #tpu.dot_dimension_numbers<[1], [0], [0], [1], [0, 0, 1, 1], [], []>} : vector<16x32xbf16>, vector<32x128xbf16>, vector<16x128xf32> -> vector<16x128xf32>
    %97 = arith.truncf %96 : vector<16x128xf32> to vector<16x128xbf16>
    %c0_37 = arith.constant 0 : index
    %c0_38 = arith.constant 0 : index
    %98 = vector.load %arg11[%c0_37, %c0_38] : memref<128x4xbf16, #tpu.memory_space<vmem>>, vector<128x4xbf16>
    %cst_39 = arith.constant dense<0.000000e+00> : vector<16x4xf32>
    %99 = tpu.matmul %97, %98, %cst_39 {dimension_numbers = #tpu.dot_dimension_numbers<[1], [0], [0], [1], [0, 0, 1, 1], [], []>} : vector<16x128xbf16>, vector<128x4xbf16>, vector<16x4xf32> -> vector<16x4xf32>
    %c0_40 = arith.constant 0 : index
    %c0_41 = arith.constant 0 : index
    %100 = vector.load %arg12[%c0_40, %c0_41] : memref<4x128xbf16, #tpu.memory_space<vmem>>, vector<4x128xbf16>
    %cst_42 = arith.constant dense<0.000000e+00> : vector<4x16xf32>
    %101 = tpu.matmul %100, %97, %cst_42 {dimension_numbers = #tpu.dot_dimension_numbers<[1], [1], [0], [0], [0, 0, 1, 0], [], []>} : vector<4x128xbf16>, vector<16x128xbf16>, vector<4x16xf32> -> vector<4x16xf32>
    %102 = vector.extract_strided_slice %99 {offsets = [0, 0], sizes = [16, 1], strides = [1, 1]} : vector<16x4xf32> to vector<16x1xf32>
    %103 = vector.extract_strided_slice %101 {offsets = [0, 0], sizes = [1, 16], strides = [1, 1]} : vector<4x16xf32> to vector<1x16xf32>
    %104 = vector.broadcast %102 : vector<16x1xf32> to vector<16x16xf32>
    %105 = vector.broadcast %103 : vector<1x16xf32> to vector<16x16xf32>
    %106 = arith.addf %104, %105 : vector<16x16xf32>
    %107 = vector.extract_strided_slice %99 {offsets = [0, 1], sizes = [16, 1], strides = [1, 1]} : vector<16x4xf32> to vector<16x1xf32>
    %108 = vector.extract_strided_slice %101 {offsets = [1, 0], sizes = [1, 16], strides = [1, 1]} : vector<4x16xf32> to vector<1x16xf32>
    %109 = vector.broadcast %107 : vector<16x1xf32> to vector<16x16xf32>
    %110 = vector.broadcast %108 : vector<1x16xf32> to vector<16x16xf32>
    %111 = arith.addf %109, %110 : vector<16x16xf32>
    %112 = vector.extract_strided_slice %99 {offsets = [0, 2], sizes = [16, 1], strides = [1, 1]} : vector<16x4xf32> to vector<16x1xf32>
    %113 = vector.extract_strided_slice %101 {offsets = [2, 0], sizes = [1, 16], strides = [1, 1]} : vector<4x16xf32> to vector<1x16xf32>
    %114 = vector.broadcast %112 : vector<16x1xf32> to vector<16x16xf32>
    %115 = vector.broadcast %113 : vector<1x16xf32> to vector<16x16xf32>
    %116 = arith.addf %114, %115 : vector<16x16xf32>
    %117 = vector.extract_strided_slice %99 {offsets = [0, 3], sizes = [16, 1], strides = [1, 1]} : vector<16x4xf32> to vector<16x1xf32>
    %118 = vector.extract_strided_slice %101 {offsets = [3, 0], sizes = [1, 16], strides = [1, 1]} : vector<4x16xf32> to vector<1x16xf32>
    %119 = vector.broadcast %117 : vector<16x1xf32> to vector<16x16xf32>
    %120 = vector.broadcast %118 : vector<1x16xf32> to vector<16x16xf32>
    %121 = arith.addf %119, %120 : vector<16x16xf32>
    %122 = tpu.concatenate %106, %111, %116, %121 in 0 : vector<16x16xf32>, vector<16x16xf32>, vector<16x16xf32>, vector<16x16xf32> -> vector<64x16xf32>
    %cst_43 = arith.constant 2.000000e-01 : f32
    %123 = vector.broadcast %cst_43 : f32 to vector<64x16xf32>
    %124 = arith.mulf %123, %122 : vector<64x16xf32>
    %125 = arith.maximumf %122, %124 : vector<64x16xf32>
    %126 = tpu.concatenate %1, %1, %1, %1 in 0 : vector<16x16xbf16>, vector<16x16xbf16>, vector<16x16xbf16>, vector<16x16xbf16> -> vector<64x16xbf16>
    %cst_44 = arith.constant 0.000000e+00 : bf16
    %127 = vector.broadcast %cst_44 : bf16 to vector<64x16xbf16>
    %128 = arith.cmpf ogt, %126, %127 : vector<64x16xbf16>
    %cst_45 = arith.constant -1.000000e+30 : f32
    %129 = vector.broadcast %cst_45 : f32 to vector<64x16xf32>
    %130 = arith.select %128, %125, %129 : vector<64x16xi1>, vector<64x16xf32>
    %cst_46 = arith.constant dense<0xFF800000> : vector<64xf32>
    %131 = vector.multi_reduction <maximumf>, %130, %cst_46 [1] : vector<64x16xf32> to vector<64xf32>
    %132 = vector.shape_cast %131 : vector<64xf32> to vector<64x1xf32>
    %133 = vector.broadcast %132 : vector<64x1xf32> to vector<64x16xf32>
    %134 = arith.subf %130, %133 : vector<64x16xf32>
    %135 = math.exp %134 : vector<64x16xf32>
    %cst_47 = arith.constant dense<0.000000e+00> : vector<64xf32>
    %136 = vector.multi_reduction <add>, %135, %cst_47 [1] : vector<64x16xf32> to vector<64xf32>
    %137 = vector.shape_cast %136 : vector<64xf32> to vector<64x1xf32>
    %138 = tpu.reciprocal %137 {approx = true} : vector<64x1xf32> -> vector<64x1xf32>
    %cst_48 = arith.constant 2.500000e-01 : f32
    %139 = vector.broadcast %cst_48 : f32 to vector<64x1xf32>
    %140 = arith.mulf %138, %139 : vector<64x1xf32>
    %141 = vector.broadcast %140 : vector<64x1xf32> to vector<64x16xf32>
    %142 = arith.mulf %135, %141 : vector<64x16xf32>
    %143 = arith.truncf %142 : vector<64x16xf32> to vector<64x16xbf16>
    %cst_49 = arith.constant dense<0.000000e+00> : vector<64x128xf32>
    %144 = tpu.matmul %143, %97, %cst_49 {dimension_numbers = #tpu.dot_dimension_numbers<[1], [0], [0], [1], [0, 0, 1, 1], [], []>} : vector<64x16xbf16>, vector<16x128xbf16>, vector<64x128xf32> -> vector<64x128xf32>
    %145 = vector.extract_strided_slice %144 {offsets = [0, 0], sizes = [16, 32], strides = [1, 1]} : vector<64x128xf32> to vector<16x32xf32>
    %146 = vector.extract_strided_slice %144 {offsets = [16, 32], sizes = [16, 32], strides = [1, 1]} : vector<64x128xf32> to vector<16x32xf32>
    %147 = arith.addf %145, %146 : vector<16x32xf32>
    %148 = vector.extract_strided_slice %144 {offsets = [32, 64], sizes = [16, 32], strides = [1, 1]} : vector<64x128xf32> to vector<16x32xf32>
    %149 = arith.addf %147, %148 : vector<16x32xf32>
    %150 = vector.extract_strided_slice %144 {offsets = [48, 96], sizes = [16, 32], strides = [1, 1]} : vector<64x128xf32> to vector<16x32xf32>
    %151 = arith.addf %149, %150 : vector<16x32xf32>
    %c0_50 = arith.constant 0 : index
    %c0_51 = arith.constant 0 : index
    %152 = vector.load %arg13[%c0_50, %c0_51] : memref<1x32xf32, #tpu.memory_space<vmem>>, vector<1x32xf32>
    %153 = vector.broadcast %152 : vector<1x32xf32> to vector<16x32xf32>
    %154 = arith.addf %151, %153 : vector<16x32xf32>
    %c0_52 = arith.constant 0 : index
    %c0_53 = arith.constant 0 : index
    %155 = vector.load %arg14[%c0_52, %c0_53] : memref<1x32xf32, #tpu.memory_space<vmem>>, vector<1x32xf32>
    %c0_54 = arith.constant 0 : index
    %c0_55 = arith.constant 0 : index
    %156 = vector.load %arg15[%c0_54, %c0_55] : memref<1x32xf32, #tpu.memory_space<vmem>>, vector<1x32xf32>
    %cst_56 = arith.constant dense<0.000000e+00> : vector<16xf32>
    %157 = vector.multi_reduction <add>, %154, %cst_56 [1] : vector<16x32xf32> to vector<16xf32>
    %158 = vector.shape_cast %157 : vector<16xf32> to vector<16x1xf32>
    %cst_57 = arith.constant 3.200000e+01 : f32
    %159 = vector.broadcast %cst_57 : f32 to vector<16x1xf32>
    %160 = arith.divf %158, %159 : vector<16x1xf32>
    %161 = vector.broadcast %160 : vector<16x1xf32> to vector<16x32xf32>
    %162 = arith.subf %154, %161 : vector<16x32xf32>
    %163 = arith.mulf %162, %162 : vector<16x32xf32>
    %cst_58 = arith.constant dense<0.000000e+00> : vector<16xf32>
    %164 = vector.multi_reduction <add>, %163, %cst_58 [1] : vector<16x32xf32> to vector<16xf32>
    %165 = vector.shape_cast %164 : vector<16xf32> to vector<16x1xf32>
    %cst_59 = arith.constant 3.200000e+01 : f32
    %166 = vector.broadcast %cst_59 : f32 to vector<16x1xf32>
    %167 = arith.divf %165, %166 : vector<16x1xf32>
    %168 = vector.broadcast %160 : vector<16x1xf32> to vector<16x32xf32>
    %169 = arith.subf %154, %168 : vector<16x32xf32>
    %cst_60 = arith.constant 9.99999974E-6 : f32
    %170 = vector.broadcast %cst_60 : f32 to vector<16x1xf32>
    %171 = arith.addf %167, %170 : vector<16x1xf32>
    %172 = math.rsqrt %171 : vector<16x1xf32>
    %173 = vector.broadcast %172 : vector<16x1xf32> to vector<16x32xf32>
    %174 = arith.mulf %169, %173 : vector<16x32xf32>
    %175 = vector.broadcast %155 : vector<1x32xf32> to vector<16x32xf32>
    %176 = arith.mulf %174, %175 : vector<16x32xf32>
    %177 = vector.broadcast %156 : vector<1x32xf32> to vector<16x32xf32>
    %178 = arith.addf %176, %177 : vector<16x32xf32>
    %179 = arith.addf %178, %93 : vector<16x32xf32>
    %180 = arith.truncf %179 : vector<16x32xf32> to vector<16x32xbf16>
    %c0_61 = arith.constant 0 : index
    %c0_62 = arith.constant 0 : index
    %181 = vector.load %arg16[%c0_61, %c0_62] : memref<32x16xbf16, #tpu.memory_space<vmem>>, vector<32x16xbf16>
    %cst_63 = arith.constant dense<0.000000e+00> : vector<16x16xf32>
    %182 = tpu.matmul %180, %181, %cst_63 {dimension_numbers = #tpu.dot_dimension_numbers<[1], [0], [0], [1], [0, 0, 1, 1], [], []>} : vector<16x32xbf16>, vector<32x16xbf16>, vector<16x16xf32> -> vector<16x16xf32>
    %183 = arith.truncf %182 : vector<16x16xf32> to vector<16x16xbf16>
    %c0_64 = arith.constant 0 : index
    %c0_65 = arith.constant 0 : index
    %184 = vector.load %arg17[%c0_64, %c0_65] : memref<16x1xbf16, #tpu.memory_space<vmem>>, vector<16x1xbf16>
    %cst_66 = arith.constant dense<0.000000e+00> : vector<16x1xf32>
    %185 = tpu.matmul %183, %184, %cst_66 {dimension_numbers = #tpu.dot_dimension_numbers<[1], [0], [0], [1], [0, 0, 1, 1], [], []>} : vector<16x16xbf16>, vector<16x1xbf16>, vector<16x1xf32> -> vector<16x1xf32>
    %c0_67 = arith.constant 0 : index
    %c0_68 = arith.constant 0 : index
    %186 = vector.load %arg18[%c0_67, %c0_68] : memref<1x16xbf16, #tpu.memory_space<vmem>>, vector<1x16xbf16>
    %cst_69 = arith.constant dense<0.000000e+00> : vector<1x16xf32>
    %187 = tpu.matmul %186, %183, %cst_69 {dimension_numbers = #tpu.dot_dimension_numbers<[1], [1], [0], [0], [0, 0, 1, 0], [], []>} : vector<1x16xbf16>, vector<16x16xbf16>, vector<1x16xf32> -> vector<1x16xf32>
    %188 = vector.broadcast %185 : vector<16x1xf32> to vector<16x16xf32>
    %189 = vector.broadcast %187 : vector<1x16xf32> to vector<16x16xf32>
    %190 = arith.addf %188, %189 : vector<16x16xf32>
    %cst_70 = arith.constant 2.000000e-01 : f32
    %191 = vector.broadcast %cst_70 : f32 to vector<16x16xf32>
    %192 = arith.mulf %191, %190 : vector<16x16xf32>
    %193 = arith.maximumf %190, %192 : vector<16x16xf32>
    %cst_71 = arith.constant 0.000000e+00 : bf16
    %194 = vector.broadcast %cst_71 : bf16 to vector<16x16xbf16>
    %195 = arith.cmpf ogt, %1, %194 : vector<16x16xbf16>
    %cst_72 = arith.constant -1.000000e+30 : f32
    %196 = vector.broadcast %cst_72 : f32 to vector<16x16xf32>
    %197 = arith.select %195, %193, %196 : vector<16x16xi1>, vector<16x16xf32>
    %cst_73 = arith.constant dense<0xFF800000> : vector<16xf32>
    %198 = vector.multi_reduction <maximumf>, %197, %cst_73 [1] : vector<16x16xf32> to vector<16xf32>
    %199 = vector.shape_cast %198 : vector<16xf32> to vector<16x1xf32>
    %200 = vector.broadcast %199 : vector<16x1xf32> to vector<16x16xf32>
    %201 = arith.subf %197, %200 : vector<16x16xf32>
    %202 = math.exp %201 : vector<16x16xf32>
    %cst_74 = arith.constant dense<0.000000e+00> : vector<16xf32>
    %203 = vector.multi_reduction <add>, %202, %cst_74 [1] : vector<16x16xf32> to vector<16xf32>
    %204 = vector.shape_cast %203 : vector<16xf32> to vector<16x1xf32>
    %205 = tpu.reciprocal %204 {approx = true} : vector<16x1xf32> -> vector<16x1xf32>
    %cst_75 = arith.constant 1.000000e+00 : f32
    %206 = vector.broadcast %cst_75 : f32 to vector<16x1xf32>
    %207 = arith.mulf %205, %206 : vector<16x1xf32>
    %208 = vector.broadcast %207 : vector<16x1xf32> to vector<16x16xf32>
    %209 = arith.mulf %202, %208 : vector<16x16xf32>
    %210 = arith.truncf %209 : vector<16x16xf32> to vector<16x16xbf16>
    %cst_76 = arith.constant dense<0.000000e+00> : vector<16x16xf32>
    %211 = tpu.matmul %210, %183, %cst_76 {dimension_numbers = #tpu.dot_dimension_numbers<[1], [0], [0], [1], [0, 0, 1, 1], [], []>} : vector<16x16xbf16>, vector<16x16xbf16>, vector<16x16xf32> -> vector<16x16xf32>
    %c0_77 = arith.constant 0 : index
    %c0_78 = arith.constant 0 : index
    %212 = vector.load %arg19[%c0_77, %c0_78] : memref<1x16xf32, #tpu.memory_space<vmem>>, vector<1x16xf32>
    %213 = vector.broadcast %212 : vector<1x16xf32> to vector<16x16xf32>
    %214 = arith.addf %211, %213 : vector<16x16xf32>
    %215 = arith.truncf %214 : vector<16x16xf32> to vector<16x16xbf16>
    %c0_79 = arith.constant 0 : index
    %c0_80 = arith.constant 0 : index
    %216 = vector.load %arg20[%c0_79, %c0_80] : memref<16x32xbf16, #tpu.memory_space<vmem>>, vector<16x32xbf16>
    %cst_81 = arith.constant dense<0.000000e+00> : vector<16x32xf32>
    %217 = tpu.matmul %215, %216, %cst_81 {dimension_numbers = #tpu.dot_dimension_numbers<[1], [0], [0], [1], [0, 0, 1, 1], [], []>} : vector<16x16xbf16>, vector<16x32xbf16>, vector<16x32xf32> -> vector<16x32xf32>
    %c0_82 = arith.constant 0 : index
    %c0_83 = arith.constant 0 : index
    %218 = vector.load %arg21[%c0_82, %c0_83] : memref<1x32xf32, #tpu.memory_space<vmem>>, vector<1x32xf32>
    %219 = vector.broadcast %218 : vector<1x32xf32> to vector<16x32xf32>
    %220 = arith.addf %217, %219 : vector<16x32xf32>
    %cst_84 = arith.constant 0.000000e+00 : f32
    %221 = vector.broadcast %cst_84 : f32 to vector<16x32xf32>
    %222 = arith.cmpf ogt, %220, %221 : vector<16x32xf32>
    %223 = math.exp %220 : vector<16x32xf32>
    %cst_85 = arith.constant 1.000000e+00 : f32
    %224 = vector.broadcast %cst_85 : f32 to vector<16x32xf32>
    %225 = arith.subf %223, %224 : vector<16x32xf32>
    %226 = arith.select %222, %220, %225 : vector<16x32xi1>, vector<16x32xf32>
    %227 = arith.truncf %226 : vector<16x32xf32> to vector<16x32xbf16>
    %c0_86 = arith.constant 0 : index
    %c0_87 = arith.constant 0 : index
    %228 = vector.load %arg22[%c0_86, %c0_87] : memref<32x16xbf16, #tpu.memory_space<vmem>>, vector<32x16xbf16>
    %cst_88 = arith.constant dense<0.000000e+00> : vector<16x16xf32>
    %229 = tpu.matmul %227, %228, %cst_88 {dimension_numbers = #tpu.dot_dimension_numbers<[1], [0], [0], [1], [0, 0, 1, 1], [], []>} : vector<16x32xbf16>, vector<32x16xbf16>, vector<16x16xf32> -> vector<16x16xf32>
    %c0_89 = arith.constant 0 : index
    %c0_90 = arith.constant 0 : index
    %230 = vector.load %arg23[%c0_89, %c0_90] : memref<1x16xf32, #tpu.memory_space<vmem>>, vector<1x16xf32>
    %231 = vector.broadcast %230 : vector<1x16xf32> to vector<16x16xf32>
    %232 = arith.addf %229, %231 : vector<16x16xf32>
    %cst_91 = arith.constant 0.000000e+00 : f32
    %233 = vector.broadcast %cst_91 : f32 to vector<16x16xf32>
    %234 = arith.cmpf ogt, %232, %233 : vector<16x16xf32>
    %235 = math.exp %232 : vector<16x16xf32>
    %cst_92 = arith.constant 1.000000e+00 : f32
    %236 = vector.broadcast %cst_92 : f32 to vector<16x16xf32>
    %237 = arith.subf %235, %236 : vector<16x16xf32>
    %238 = arith.select %234, %232, %237 : vector<16x16xi1>, vector<16x16xf32>
    %239 = arith.truncf %238 : vector<16x16xf32> to vector<16x16xbf16>
    %c0_93 = arith.constant 0 : index
    %c0_94 = arith.constant 0 : index
    %240 = vector.load %arg24[%c0_93, %c0_94] : memref<16x1xbf16, #tpu.memory_space<vmem>>, vector<16x1xbf16>
    %cst_95 = arith.constant dense<0.000000e+00> : vector<16x1xf32>
    %241 = tpu.matmul %239, %240, %cst_95 {dimension_numbers = #tpu.dot_dimension_numbers<[1], [0], [0], [1], [0, 0, 1, 1], [], []>} : vector<16x16xbf16>, vector<16x1xbf16>, vector<16x1xf32> -> vector<16x1xf32>
    %c0_96 = arith.constant 0 : index
    %c0_97 = arith.constant 0 : index
    %242 = vector.load %arg25[%c0_96, %c0_97] : memref<1x1xf32, #tpu.memory_space<vmem>>, vector<1x1xf32>
    %243 = vector.broadcast %242 : vector<1x1xf32> to vector<16x1xf32>
    %244 = arith.addf %241, %243 : vector<16x1xf32>
    %cst_98 = arith.constant 0.000000e+00 : f32
    %245 = vector.broadcast %cst_98 : f32 to vector<16x1xf32>
    %246 = arith.subf %245, %244 : vector<16x1xf32>
    %247 = math.exp %246 : vector<16x1xf32>
    %cst_99 = arith.constant 1.000000e+00 : f32
    %248 = vector.broadcast %cst_99 : f32 to vector<16x1xf32>
    %249 = arith.addf %248, %247 : vector<16x1xf32>
    %cst_100 = arith.constant 1.000000e+00 : f32
    %250 = vector.broadcast %cst_100 : f32 to vector<16x1xf32>
    %251 = arith.divf %250, %249 : vector<16x1xf32>
    %c0_101 = arith.constant 0 : index
    %c0_102 = arith.constant 0 : index
    %252 = vector.load %arg26[%c0_101, %c0_102] : memref<16x1xf32, #tpu.memory_space<vmem>>, vector<16x1xf32>
    tpu.vector_store %arg26[%c0_101, %c0_102], %251 {strides = array<i32>} : memref<16x1xf32, #tpu.memory_space<vmem>>, vector<16x1xf32>,
    return
  }
}

</mosaic_0001>

<llo_original>
// kernel: tpu_custom_call.1
$region0: #{tpu_custom_call.1}
  #allocation0 [shape = 'u32[]', space=smem, size = 0x4, offset = 0x4, fixed_abs, tag = 'smem constant byte address 0x4 - core index']
  #allocation1 [shape = 'u32[144,128]{1,0:T(1,128)}', space=vmem, size = 0x12000, scoped, tag = 'internal scratch']
  #allocation2 [shape = 'f32[1,1]{1,0:T(1,128)S(1)}', space=vmem, size = 0x200, scoped, tag = 'scoped memory for tpu_custom_call.1']
  %s0 = inlined_call_operand.vmem [shape: f32[16,8], index: 0, kind: input, shape index: {}]
  %s1 = inlined_call_operand.vmem [shape: bf16[16,16], index: 1, kind: input, shape index: {}]
  %s2 = inlined_call_operand.vmem [shape: bf16[8,128], index: 2, kind: input, shape index: {}]
  %s3 = inlined_call_operand.vmem [shape: bf16[128,4], index: 3, kind: input, shape index: {}]
  %s4 = inlined_call_operand.vmem [shape: bf16[4,128], index: 4, kind: input, shape index: {}]
  %s5 = inlined_call_operand.vmem [shape: f32[1,32], index: 5, kind: input, shape index: {}]
  %s6 = inlined_call_operand.vmem [shape: f32[1,32], index: 6, kind: input, shape index: {}]
  %s7 = inlined_call_operand.vmem [shape: f32[1,32], index: 7, kind: input, shape index: {}]
  %s8 = inlined_call_operand.vmem [shape: bf16[8,32], index: 8, kind: input, shape index: {}]
  %s9 = inlined_call_operand.vmem [shape: f32[1,32], index: 9, kind: input, shape index: {}]
  %s10 = inlined_call_operand.vmem [shape: bf16[32,128], index: 10, kind: input, shape index: {}]
  %s11 = inlined_call_operand.vmem [shape: bf16[128,4], index: 11, kind: input, shape index: {}]
  %s12 = inlined_call_operand.vmem [shape: bf16[4,128], index: 12, kind: input, shape index: {}]
  %s13 = inlined_call_operand.vmem [shape: f32[1,32], index: 13, kind: input, shape index: {}]
  %s14 = inlined_call_operand.vmem [shape: f32[1,32], index: 14, kind: input, shape index: {}]
  %s15 = inlined_call_operand.vmem [shape: f32[1,32], index: 15, kind: input, shape index: {}]
  %s16 = inlined_call_operand.vmem [shape: bf16[32,16], index: 16, kind: input, shape index: {}]
  %s17 = inlined_call_operand.vmem [shape: bf16[16,1], index: 17, kind: input, shape index: {}]
  %s18 = inlined_call_operand.vmem [shape: bf16[1,16], index: 18, kind: input, shape index: {}]
  %s19 = inlined_call_operand.vmem [shape: f32[1,16], index: 19, kind: input, shape index: {}]
  %s20 = inlined_call_operand.vmem [shape: bf16[16,32], index: 20, kind: input, shape index: {}]
  %s21 = inlined_call_operand.vmem [shape: f32[1,32], index: 21, kind: input, shape index: {}]
  %s22 = inlined_call_operand.vmem [shape: bf16[32,16], index: 22, kind: input, shape index: {}]
  %s23 = inlined_call_operand.vmem [shape: f32[1,16], index: 23, kind: input, shape index: {}]
  %s24 = inlined_call_operand.vmem [shape: bf16[16,1], index: 24, kind: input, shape index: {}]
  %s25 = inlined_call_operand.<no memory space> [shape: f32[1,1], index: 25, kind: input, shape index: {}]
  %s26 = inlined_call_operand.vmem [shape: f32[16,1], index: 26, kind: output, shape index: {}]
  %s27 = sld [smem:[#allocation0]]
  $region114: #{tpu_custom_call.1} parent=0
    _
  %s29 = ssub.s32 1, %s27
  %s30 = scalar_select 0, %s29, %s27
  %v31 = vstv %s25
  %32 = vst [vmem:[#allocation2] sm:$0x1] %v31
  // Predicated region
  $region2: #{tpu_custom_call.1} parent=0 // pred_check
    _
  $region3: #{tpu_custom_call.1} parent=0 // pred_check_branch
    %34 = sbr.rel (0) target = $region5
  $region4: #{tpu_custom_call.1} parent=0 // pred_region
    _
  $region5: #{tpu_custom_call.1} parent=0 // pred_fallthru
    _
  // Predicated region
  $region6: #{tpu_custom_call.1} parent=0 // pred_check
    _
  $region7: #{tpu_custom_call.1} parent=0 // pred_check_branch
    %36 = sbr.rel (0) target = $region9
  $region8: #{tpu_custom_call.1} parent=0 // pred_region
    _
  $region9: #{tpu_custom_call.1} parent=0 // pred_fallthru
    _
  // Predicated region
  $region10: #{tpu_custom_call.1} parent=0 // pred_check
    _
  $region11: #{tpu_custom_call.1} parent=0 // pred_check_branch
    %38 = sbr.rel (0) target = $region13
  $region12: #{tpu_custom_call.1} parent=0 // pred_region
    _
  $region13: #{tpu_custom_call.1} parent=0 // pred_fallthru
    _
  // Predicated region
  $region14: #{tpu_custom_call.1} parent=0 // pred_check
    _
  $region15: #{tpu_custom_call.1} parent=0 // pred_check_branch
    %40 = sbr.rel (0) target = $region17
  $region16: #{tpu_custom_call.1} parent=0 // pred_region
    _
  $region17: #{tpu_custom_call.1} parent=0 // pred_fallthru
    _
  // Predicated region
  $region18: #{tpu_custom_call.1} parent=0 // pred_check
    _
  $region19: #{tpu_custom_call.1} parent=0 // pred_check_branch
    %42 = sbr.rel (0) target = $region21
  $region20: #{tpu_custom_call.1} parent=0 // pred_region
    _
  $region21: #{tpu_custom_call.1} parent=0 // pred_fallthru
    _
  // Predicated region
  $region22: #{tpu_custom_call.1} parent=0 // pred_check
    _
  $region23: #{tpu_custom_call.1} parent=0 // pred_check_branch
    %44 = sbr.rel (0) target = $region25
  $region24: #{tpu_custom_call.1} parent=0 // pred_region
    _
  $region25: #{tpu_custom_call.1} parent=0 // pred_fallthru
    _
  // Predicated region
  $region26: #{tpu_custom_call.1} parent=0 // pred_check
    _
  $region27: #{tpu_custom_call.1} parent=0 // pred_check_branch
    %46 = sbr.rel (0) target = $region29
  $region28: #{tpu_custom_call.1} parent=0 // pred_region
    _
  $region29: #{tpu_custom_call.1} parent=0 // pred_fallthru
    _
  // Predicated region
  $region30: #{tpu_custom_call.1} parent=0 // pred_check
    _
  $region31: #{tpu_custom_call.1} parent=0 // pred_check_branch
    %48 = sbr.rel (0) target = $region33
  $region32: #{tpu_custom_call.1} parent=0 // pred_region
    _
  $region33: #{tpu_custom_call.1} parent=0 // pred_fallthru
    _
  // Predicated region
  $region34: #{tpu_custom_call.1} parent=0 // pred_check
    _
  $region35: #{tpu_custom_call.1} parent=0 // pred_check_branch
    %50 = sbr.rel (0) target = $region37
  $region36: #{tpu_custom_call.1} parent=0 // pred_region
    _
  $region37: #{tpu_custom_call.1} parent=0 // pred_fallthru
    _
  // Predicated region
  $region38: #{tpu_custom_call.1} parent=0 // pred_check
    _
  $region39: #{tpu_custom_call.1} parent=0 // pred_check_branch
    %52 = sbr.rel (0) target = $region41
  $region40: #{tpu_custom_call.1} parent=0 // pred_region
    _
  $region41: #{tpu_custom_call.1} parent=0 // pred_fallthru
    _
  // Predicated region
  $region42: #{tpu_custom_call.1} parent=0 // pred_check
    _
  $region43: #{tpu_custom_call.1} parent=0 // pred_check_branch
    %54 = sbr.rel (0) target = $region45
  $region44: #{tpu_custom_call.1} parent=0 // pred_region
    _
  $region45: #{tpu_custom_call.1} parent=0 // pred_fallthru
    _
  // Predicated region
  $region46: #{tpu_custom_call.1} parent=0 // pred_check
    _
  $region47: #{tpu_custom_call.1} parent=0 // pred_check_branch
    %56 = sbr.rel (0) target = $region49
  $region48: #{tpu_custom_call.1} parent=0 // pred_region
    _
  $region49: #{tpu_custom_call.1} parent=0 // pred_fallthru
    _
  // Predicated region
  $region50: #{tpu_custom_call.1} parent=0 // pred_check
    _
  $region51: #{tpu_custom_call.1} parent=0 // pred_check_branch
    %58 = sbr.rel (0) target = $region53
  $region52: #{tpu_custom_call.1} parent=0 // pred_region
    _
  $region53: #{tpu_custom_call.1} parent=0 // pred_fallthru
    _
  // Predicated region
  $region54: #{tpu_custom_call.1} parent=0 // pred_check
    _
  $region55: #{tpu_custom_call.1} parent=0 // pred_check_branch
    %60 = sbr.rel (0) target = $region57
  $region56: #{tpu_custom_call.1} parent=0 // pred_region
    _
  $region57: #{tpu_custom_call.1} parent=0 // pred_fallthru
    _
  // Predicated region
  $region58: #{tpu_custom_call.1} parent=0 // pred_check
    _
  $region59: #{tpu_custom_call.1} parent=0 // pred_check_branch
    %62 = sbr.rel (0) target = $region61
  $region60: #{tpu_custom_call.1} parent=0 // pred_region
    _
  $region61: #{tpu_custom_call.1} parent=0 // pred_fallthru
    _
  // Predicated region
  $region62: #{tpu_custom_call.1} parent=0 // pred_check
    _
  $region63: #{tpu_custom_call.1} parent=0 // pred_check_branch
    %64 = sbr.rel (0) target = $region65
  $region64: #{tpu_custom_call.1} parent=0 // pred_region
    _
  $region65: #{tpu_custom_call.1} parent=0 // pred_fallthru
    _
  // Predicated region
  $region66: #{tpu_custom_call.1} parent=0 // pred_check
    _
  $region67: #{tpu_custom_call.1} parent=0 // pred_check_branch
    %66 = sbr.rel (0) target = $region69
  $region68: #{tpu_custom_call.1} parent=0 // pred_region
    _
  $region69: #{tpu_custom_call.1} parent=0 // pred_fallthru
    _
  // Predicated region
  $region70: #{tpu_custom_call.1} parent=0 // pred_check
    _
  $region71: #{tpu_custom_call.1} parent=0 // pred_check_branch
    %68 = sbr.rel (0) target = $region73
  $region72: #{tpu_custom_call.1} parent=0 // pred_region
    _
  $region73: #{tpu_custom_call.1} parent=0 // pred_fallthru
    _
  // Predicated region
  $region74: #{tpu_custom_call.1} parent=0 // pred_check
    _
  $region75: #{tpu_custom_call.1} parent=0 // pred_check_branch
    %70 = sbr.rel (0) target = $region77
  $region76: #{tpu_custom_call.1} parent=0 // pred_region
    _
  $region77: #{tpu_custom_call.1} parent=0 // pred_fallthru
    _
  // Predicated region
  $region78: #{tpu_custom_call.1} parent=0 // pred_check
    _
  $region79: #{tpu_custom_call.1} parent=0 // pred_check_branch
    %72 = sbr.rel (0) target = $region81
  $region80: #{tpu_custom_call.1} parent=0 // pred_region
    _
  $region81: #{tpu_custom_call.1} parent=0 // pred_fallthru
    _
  // Predicated region
  $region82: #{tpu_custom_call.1} parent=0 // pred_check
    _
  $region83: #{tpu_custom_call.1} parent=0 // pred_check_branch
    %74 = sbr.rel (0) target = $region85
  $region84: #{tpu_custom_call.1} parent=0 // pred_region
    _
  $region85: #{tpu_custom_call.1} parent=0 // pred_fallthru
    _
  // Predicated region
  $region86: #{tpu_custom_call.1} parent=0 // pred_check
    _
  $region87: #{tpu_custom_call.1} parent=0 // pred_check_branch
    %76 = sbr.rel (0) target = $region89
  $region88: #{tpu_custom_call.1} parent=0 // pred_region
    _
  $region89: #{tpu_custom_call.1} parent=0 // pred_fallthru
    _
  // Predicated region
  $region90: #{tpu_custom_call.1} parent=0 // pred_check
    _
  $region91: #{tpu_custom_call.1} parent=0 // pred_check_branch
    %78 = sbr.rel (0) target = $region93
  $region92: #{tpu_custom_call.1} parent=0 // pred_region
    _
  $region93: #{tpu_custom_call.1} parent=0 // pred_fallthru
    _
  // Predicated region
  $region94: #{tpu_custom_call.1} parent=0 // pred_check
    _
  $region95: #{tpu_custom_call.1} parent=0 // pred_check_branch
    %80 = sbr.rel (0) target = $region97
  $region96: #{tpu_custom_call.1} parent=0 // pred_region
    _
  $region97: #{tpu_custom_call.1} parent=0 // pred_fallthru
    _
  // Predicated region
  $region98: #{tpu_custom_call.1} parent=0 // pred_check
    _
  $region99: #{tpu_custom_call.1} parent=0 // pred_check_branch
    %82 = sbr.rel (0) target = $region101
  $region100: #{tpu_custom_call.1} parent=0 // pred_region
    _
  $region101: #{tpu_custom_call.1} parent=0 // pred_fallthru
    _
  // Predicated region
  $region102: #{tpu_custom_call.1} parent=0 // pred_check
    _
  $region103: #{tpu_custom_call.1} parent=0 // pred_check_branch
    %84 = sbr.rel (0) target = $region105
  $region104: #{tpu_custom_call.1} parent=0 // pred_region
    _
  $region105: #{tpu_custom_call.1} parent=0 // pred_fallthru
    _
  %v88 = vld [vmem:[%s0] sm:$0xff]
  %v89 = vld [vmem:[%s0 + $0x8] sm:$0xff]
  %v90 = vld [vmem:[%s1] sm:$0xf]
  %v91 = vld [vmem:[%s1 + $0x4] sm:$0xf]
  %v92 = vpack.c.bf16 %v89, %v88
  %v93 = vld [vmem:[%s8] sm:$0xf]
  %v94 = vld [vmem:[%s9] sm:$0x1]
  %v96 = vlaneseq
  %v97 = vshrl.u32 %v96, 7
  %v98 = vsub.s32 0, %v97
  %v99 = vrot.slane %v94, %v98
  %vm101 = vcmask 64512
  %v103 = vsel %vm101, %v92, 0
  %vm105 = vcmask 1043456
  %v107 = vsel %vm105, %v93, 0
  %109 = vmatprep.subr.bf16.mxu0 0
  %110 = vmatpush1.bf16.msra.mxu0 %v107
  %111 = vmatprep.subr.bf16.mxu0 0
  %112 = vmatpush1.bf16.msra.mxu0 0
  %113 = vmatprep.subr.bf16.mxu0 0
  %114 = vmatpush1.bf16.msra.mxu0 0
  %115 = vmatprep.subr.bf16.mxu0 0
  %116 = vmatpush1.bf16.msra.mxu0 0
  %117 = vmatprep.subr.bf16.mxu0 0
  %118 = vmatpush1.bf16.msra.mxu0 0
  %119 = vmatprep.subr.bf16.mxu0 0
  %120 = vmatpush1.bf16.msra.mxu0 0
  %121 = vmatprep.subr.bf16.mxu0 0
  %122 = vmatpush1.bf16.msra.mxu0 0
  %123 = vmatprep.subr.bf16.mxu0 0
  %124 = vmatpush1.bf16.msra.mxu0 0
  %125 = vmatprep.subr.bf16.mxu0 0
  %126 = vmatpush1.bf16.msra.mxu0 0
  %127 = vmatprep.subr.bf16.mxu0 0
  %128 = vmatpush1.bf16.msra.mxu0 0
  %129 = vmatprep.subr.bf16.mxu0 0
  %130 = vmatpush1.bf16.msra.mxu0 0
  %131 = vmatprep.subr.bf16.mxu0 0
  %132 = vmatpush1.bf16.msra.mxu0 0
  %133 = vmatprep.subr.bf16.mxu0 0
  %134 = vmatpush1.bf16.msra.mxu0 0
  %135 = vmatprep.subr.bf16.mxu0 0
  %136 = vmatpush1.bf16.msra.mxu0 0
  %137 = vmatprep.subr.bf16.mxu0 0
  %138 = vmatpush1.bf16.msra.mxu0 0
  %139 = vmatprep.subr.bf16.mxu0 0
  %140 = vmatpush1.bf16.msra.mxu0 0
  %141 = vmatprep.mubr.bf16.mxu0 0
  %142 = vmatmul.mubr.bf16.gmra.mrb[0].mxu0 %v103
  %v143 = vpop.f32.mrb[0].mxu0
  %v144 = vadd.f32 %v99, %v143
  %v145 = vpop.f32.mrb[0].mxu0
  %v146 = vpop.f32.mrb[0].mxu0
  %v147 = vadd.f32 %v99, %v146
  %v148 = vpop.f32.mrb[0].mxu0
  %149 = vdwg.mxu0
  %v150 = vld [vmem:[%s2] sm:$0xf]
  %v152 = vsel %vm105, %v150, 0
  %154 = vmatprep.subr.bf16.mxu0 0
  %155 = vmatpush1.bf16.msra.mxu0 %v152
  %156 = vmatprep.subr.bf16.mxu0 0
  %157 = vmatpush1.bf16.msra.mxu0 0
  %158 = vmatprep.subr.bf16.mxu0 0
  %159 = vmatpush1.bf16.msra.mxu0 0
  %160 = vmatprep.subr.bf16.mxu0 0
  %161 = vmatpush1.bf16.msra.mxu0 0
  %162 = vmatprep.subr.bf16.mxu0 0
  %163 = vmatpush1.bf16.msra.mxu0 0
  %164 = vmatprep.subr.bf16.mxu0 0
  %165 = vmatpush1.bf16.msra.mxu0 0
  %166 = vmatprep.subr.bf16.mxu0 0
  %167 = vmatpush1.bf16.msra.mxu0 0
  %168 = vmatprep.subr.bf16.mxu0 0
  %169 = vmatpush1.bf16.msra.mxu0 0
  %170 = vmatprep.subr.bf16.mxu0 0
  %171 = vmatpush1.bf16.msra.mxu0 0
  %172 = vmatprep.subr.bf16.mxu0 0
  %173 = vmatpush1.bf16.msra.mxu0 0
  %174 = vmatprep.subr.bf16.mxu0 0
  %175 = vmatpush1.bf16.msra.mxu0 0
  %176 = vmatprep.subr.bf16.mxu0 0
  %177 = vmatpush1.bf16.msra.mxu0 0
  %178 = vmatprep.subr.bf16.mxu0 0
  %179 = vmatpush1.bf16.msra.mxu0 0
  %180 = vmatprep.subr.bf16.mxu0 0
  %181 = vmatpush1.bf16.msra.mxu0 0
  %182 = vmatprep.subr.bf16.mxu0 0
  %183 = vmatpush1.bf16.msra.mxu0 0
  %184 = vmatprep.subr.bf16.mxu0 0
  %185 = vmatpush1.bf16.msra.mxu0 0
  %186 = vmatprep.mubr.bf16.mxu0 0
  %187 = vmatmul.mubr.bf16.gmra.mrb[0].mxu0 %v103
  %v188 = vpop.f32.mrb[0].mxu0
  %v189 = vadd.f32 0.0, %v188
  %v190 = vpop.f32.mrb[0].mxu0
  %v191 = vpop.f32.mrb[0].mxu0
  %v192 = vadd.f32 0.0, %v191
  %v193 = vpop.f32.mrb[0].mxu0
  %194 = vdwg.mxu0
  %v195 = vpack.c.bf16 %v192, %v189
  %v196 = vld [vmem:[%s3] sm:$0xf]
  %v197 = vld [vmem:[%s3 + $0x4] sm:$0xf]
  %v198 = vld [vmem:[%s3 + $0x8] sm:$0xf]
  %v199 = vld [vmem:[%s3 + $0xc] sm:$0xf]
  %v200 = vld [vmem:[%s3 + $0x10] sm:$0xf]
  %v201 = vld [vmem:[%s3 + $0x14] sm:$0xf]
  %v202 = vld [vmem:[%s3 + $0x18] sm:$0xf]
  %v203 = vld [vmem:[%s3 + $0x1c] sm:$0xf]
  %v204 = vld [vmem:[%s3 + $0x20] sm:$0xf]
  %v205 = vld [vmem:[%s3 + $0x24] sm:$0xf]
  %v206 = vld [vmem:[%s3 + $0x28] sm:$0xf]
  %v207 = vld [vmem:[%s3 + $0x2c] sm:$0xf]
  %v208 = vld [vmem:[%s3 + $0x30] sm:$0xf]
  %v209 = vld [vmem:[%s3 + $0x34] sm:$0xf]
  %v210 = vld [vmem:[%s3 + $0x38] sm:$0xf]
  %v211 = vld [vmem:[%s3 + $0x3c] sm:$0xf]
  %v228 = vunpack.c.l.b16 %v196
  %v229 = vunpack.c.l.b16 %v197
  %v230 = vunpack.c.l.b16 %v198
  %v231 = vunpack.c.l.b16 %v199
  %v232 = vunpack.c.l.b16 %v200
  %v233 = vunpack.c.l.b16 %v201
  %v234 = vunpack.c.l.b16 %v202
  %v235 = vunpack.c.l.b16 %v203
  %v236 = vunpack.c.l.b16 %v204
  %v237 = vunpack.c.l.b16 %v205
  %v238 = vunpack.c.l.b16 %v206
  %v239 = vunpack.c.l.b16 %v207
  %v240 = vunpack.c.l.b16 %v208
  %v241 = vunpack.c.l.b16 %v209
  %v242 = vunpack.c.l.b16 %v210
  %v243 = vunpack.c.l.b16 %v211
  %v244 = vpack.c.b16 %v229, %v228
  %v245 = vpack.c.b16 %v231, %v230
  %v246 = vpack.c.b16 %v233, %v232
  %v247 = vpack.c.b16 %v235, %v234
  %v248 = vpack.c.b16 %v237, %v236
  %v249 = vpack.c.b16 %v239, %v238
  %v250 = vpack.c.b16 %v241, %v240
  %v251 = vpack.c.b16 %v243, %v242
  %260 = vmatprep.subr.bf16.mxu0 0
  %261 = vmatpush1.bf16.msra.mxu0 %v244
  %262 = vmatprep.subr.bf16.mxu0 0
  %263 = vmatpush1.bf16.msra.mxu0 %v245
  %264 = vmatprep.subr.bf16.mxu0 0
  %265 = vmatpush1.bf16.msra.mxu0 %v246
  %266 = vmatprep.subr.bf16.mxu0 0
  %267 = vmatpush1.bf16.msra.mxu0 %v247
  %268 = vmatprep.subr.bf16.mxu0 0
  %269 = vmatpush1.bf16.msra.mxu0 %v248
  %270 = vmatprep.subr.bf16.mxu0 0
  %271 = vmatpush1.bf16.msra.mxu0 %v249
  %272 = vmatprep.subr.bf16.mxu0 0
  %273 = vmatpush1.bf16.msra.mxu0 %v250
  %274 = vmatprep.subr.bf16.mxu0 0
  %275 = vmatpush1.bf16.msra.mxu0 %v251
  %276 = vmatprep.subr.bf16.mxu0 0
  %277 = vmatpush1.bf16.msra.mxu0 0
  %278 = vmatprep.subr.bf16.mxu0 0
  %279 = vmatpush1.bf16.msra.mxu0 0
  %280 = vmatprep.subr.bf16.mxu0 0
  %281 = vmatpush1.bf16.msra.mxu0 0
  %282 = vmatprep.subr.bf16.mxu0 0
  %283 = vmatpush1.bf16.msra.mxu0 0
  %284 = vmatprep.subr.bf16.mxu0 0
  %285 = vmatpush1.bf16.msra.mxu0 0
  %286 = vmatprep.subr.bf16.mxu0 0
  %287 = vmatpush1.bf16.msra.mxu0 0
  %288 = vmatprep.subr.bf16.mxu0 0
  %289 = vmatpush1.bf16.msra.mxu0 0
  %290 = vmatprep.subr.bf16.mxu0 0
  %291 = vmatpush1.bf16.msra.mxu0 0
  %292 = vmatprep.mubr.bf16.mxu0 0
  %293 = vmatmul.mubr.bf16.gmra.mrb[0].mxu0 %v195
  %v294 = vpop.f32.mrb[0].mxu0
  %v295 = vadd.f32 0.0, %v294
  %v296 = vpop.f32.mrb[0].mxu0
  %v297 = vpop.f32.mrb[0].mxu0
  %v298 = vadd.f32 0.0, %v297
  %v299 = vpop.f32.mrb[0].mxu0
  %300 = vdwg.mxu0
  %v301 = vld [vmem:[%s4] sm:$0x3]
  %302 = vmatprep.subr.bf16.mxu0 0
  %303 = vmatpush1.bf16.xpose.msra.mxu0 %v195
  %304 = vmatprep.subr.bf16.mxu0 0
  %305 = vmatpush1.bf16.xpose.msra.mxu0 0
  %306 = vmatprep.subr.bf16.mxu0 0
  %307 = vmatpush1.bf16.xpose.msra.mxu0 0
  %308 = vmatprep.subr.bf16.mxu0 0
  %309 = vmatpush1.bf16.xpose.msra.mxu0 0
  %310 = vmatprep.subr.bf16.mxu0 0
  %311 = vmatpush1.bf16.xpose.msra.mxu0 0
  %312 = vmatprep.subr.bf16.mxu0 0
  %313 = vmatpush1.bf16.xpose.msra.mxu0 0
  %314 = vmatprep.subr.bf16.mxu0 0
  %315 = vmatpush1.bf16.xpose.msra.mxu0 0
  %316 = vmatprep.subr.bf16.mxu0 0
  %317 = vmatpush1.bf16.xpose.msra.mxu0 0
  %318 = vmatprep.subr.bf16.mxu0 0
  %319 = vmatpush1.bf16.xpose.msra.mxu0 0
  %320 = vmatprep.subr.bf16.mxu0 0
  %321 = vmatpush1.bf16.xpose.msra.mxu0 0
  %322 = vmatprep.subr.bf16.mxu0 0
  %323 = vmatpush1.bf16.xpose.msra.mxu0 0
  %324 = vmatprep.subr.bf16.mxu0 0
  %325 = vmatpush1.bf16.xpose.msra.mxu0 0
  %326 = vmatprep.subr.bf16.mxu0 0
  %327 = vmatpush1.bf16.xpose.msra.mxu0 0
  %328 = vmatprep.subr.bf16.mxu0 0
  %329 = vmatpush1.bf16.xpose.msra.mxu0 0
  %330 = vmatprep.subr.bf16.mxu0 0
  %331 = vmatpush1.bf16.xpose.msra.mxu0 0
  %332 = vmatprep.subr.bf16.mxu0 0
  %333 = vmatpush1.bf16.xpose.msra.mxu0 0
  %334 = vmatprep.mubr.bf16.mxu0 0
  %335 = vmatmul.mubr.bf16.gmra.mrb[0].mxu0 %v301
  %v336 = vpop.f32.mrb[0].mxu0
  %v337 = vadd.f32 0.0, %v336
  %v338 = vpop.f32.mrb[0].mxu0
  %v339 = vpop.f32.mrb[0].mxu0
  %v340 = vpop.f32.mrb[0].mxu0
  %341 = vdwg.mxu0
  %343 = vset.pattern.permute.xlu0 0
  %344 = vperm.xlu0 %343, %v295
  %v345 = vpop.permute.xlu0 %344
  %348 = vset.pattern.permute.xlu0 0
  %349 = vperm.xlu0 %348, %v298
  %v350 = vpop.permute.xlu0 %349
  %v352 = vlaneseq
  %v353 = vshrl.u32 %v352, 7
  %v354 = vsub.s32 0, %v353
  %v355 = vrot.slane %v337, %v354
  %v356 = vadd.f32 %v345, %v355
  %v357 = vadd.f32 %v350, %v355
  %358 = vset.pattern.permute.xlu0 1
  %359 = vperm.xlu0 %358, %v295
  %v360 = vpop.permute.xlu0 %359
  %362 = vset.pattern.permute.xlu0 1
  %363 = vperm.xlu0 %362, %v298
  %v364 = vpop.permute.xlu0 %363
  %v366 = vlaneseq
  %v367 = vshrl.u32 %v366, 7
  %v368 = vsub.s32 1, %v367
  %v369 = vrot.slane %v337, %v368
  %v370 = vadd.f32 %v360, %v369
  %v371 = vadd.f32 %v364, %v369
  %372 = vset.pattern.permute.xlu0 2
  %373 = vperm.xlu0 %372, %v295
  %v374 = vpop.permute.xlu0 %373
  %376 = vset.pattern.permute.xlu0 2
  %377 = vperm.xlu0 %376, %v298
  %v378 = vpop.permute.xlu0 %377
  %v380 = vlaneseq
  %v381 = vshrl.u32 %v380, 7
  %v382 = vsub.s32 2, %v381
  %v383 = vrot.slane %v337, %v382
  %v384 = vadd.f32 %v374, %v383
  %v385 = vadd.f32 %v378, %v383
  %386 = vset.pattern.permute.xlu0 3
  %387 = vperm.xlu0 %386, %v295
  %v388 = vpop.permute.xlu0 %387
  %390 = vset.pattern.permute.xlu0 3
  %391 = vperm.xlu0 %390, %v298
  %v392 = vpop.permute.xlu0 %391
  %v394 = vlaneseq
  %v395 = vshrl.u32 %v394, 7
  %v396 = vsub.s32 3, %v395
  %v397 = vrot.slane %v337, %v396
  %v398 = vadd.f32 %v388, %v397
  %v399 = vadd.f32 %v392, %v397
  %v400 = vmul.f32 %v356, 0.2
  %v401 = vmul.f32 %v357, 0.2
  %v402 = vmul.f32 %v370, 0.2
  %v403 = vmul.f32 %v371, 0.2
  %v404 = vmul.f32 %v384, 0.2
  %v405 = vmul.f32 %v385, 0.2
  %v406 = vmul.f32 %v398, 0.2
  %v407 = vmul.f32 %v399, 0.2
  %v408 = vmax.f32 %v356, %v400
  %v409 = vmax.f32 %v357, %v401
  %v410 = vmax.f32 %v370, %v402
  %v411 = vmax.f32 %v371, %v403
  %v412 = vmax.f32 %v384, %v404
  %v413 = vmax.f32 %v385, %v405
  %v414 = vmax.f32 %v398, %v406
  %v415 = vmax.f32 %v399, %v407
  %v418 = vunpack.c.l.b16 %v90
  %v419 = vunpack.c.l.b16 %v91
  %v420 = vpack.c.b16 %v419, %v418
  %vm422 = vcmp.gt.bf16.partialorder %v420, 0
  %v423 = vsel %vm422, 65537, 0
  %v424 = vunpack.c.l.b16 %v423
  %v425 = vunpack.c.h.b16 %v423
  %v426 = vpack.c.b16 %v424, %v424
  %v427 = vpack.c.b16 %v425, %v425
  %vm428 = vcmp.ne.s16.totalorder %v426, 0
  %vm429 = vcmp.ne.s16.totalorder %v427, 0
  %v430 = vsel %vm428, 65537, 0
  %v431 = vsel %vm429, 65537, 0
  %v432 = vunpack.c.l.b16 %v430
  %v433 = vunpack.c.l.b16 %v431
  %vm434 = vcmp.ne.s32.totalorder %v432, 0
  %vm435 = vcmp.ne.s32.totalorder %v433, 0
  %v436 = vsel %vm434, %v408, -1e+30
  %v437 = vsel %vm435, %v409, -1e+30
  %v438 = vsel %vm434, %v410, -1e+30
  %v439 = vsel %vm435, %v411, -1e+30
  %v440 = vsel %vm434, %v412, -1e+30
  %v441 = vsel %vm435, %v413, -1e+30
  %v442 = vsel %vm434, %v414, -1e+30
  %v443 = vsel %vm435, %v415, -1e+30
  %vm444 = vcmask 130048
  %v445 = vsel %vm444, %v436, -inf
  %446 = vmax.xlane.f32.xlu0 %v445
  %v447 = vpop.xlane.xlu0 %446
  %v448 = vsel %vm444, %v437, -inf
  %449 = vmax.xlane.f32.xlu0 %v448
  %v450 = vpop.xlane.xlu0 %449
  %v451 = vsel %vm444, %v438, -inf
  %452 = vmax.xlane.f32.xlu0 %v451
  %v453 = vpop.xlane.xlu0 %452
  %v454 = vsel %vm444, %v439, -inf
  %455 = vmax.xlane.f32.xlu0 %v454
  %v456 = vpop.xlane.xlu0 %455
  %v457 = vsel %vm444, %v440, -inf
  %458 = vmax.xlane.f32.xlu0 %v457
  %v459 = vpop.xlane.xlu0 %458
  %v460 = vsel %vm444, %v441, -inf
  %461 = vmax.xlane.f32.xlu0 %v460
  %v462 = vpop.xlane.xlu0 %461
  %v463 = vsel %vm444, %v442, -inf
  %464 = vmax.xlane.f32.xlu0 %v463
  %v465 = vpop.xlane.xlu0 %464
  %v466 = vsel %vm444, %v443, -inf
  %467 = vmax.xlane.f32.xlu0 %v466
  %v468 = vpop.xlane.xlu0 %467
  %v469 = vsub.f32 %v436, %v447
  %v470 = vsub.f32 %v437, %v450
  %v471 = vsub.f32 %v438, %v453
  %v472 = vsub.f32 %v439, %v456
  %v473 = vsub.f32 %v440, %v459
  %v474 = vsub.f32 %v441, %v462
  %v475 = vsub.f32 %v442, %v465
  %v476 = vsub.f32 %v443, %v468
  %v477 = vmul.f32 %v469, 1.442695
  %v478 = vpow.pop %v477
  %v479 = vmul.f32 %v470, 1.442695
  %v480 = vpow.pop %v479
  %v481 = vmul.f32 %v471, 1.442695
  %v482 = vpow.pop %v481
  %v483 = vmul.f32 %v472, 1.442695
  %v484 = vpow.pop %v483
  %v485 = vmul.f32 %v473, 1.442695
  %v486 = vpow.pop %v485
  %v487 = vmul.f32 %v474, 1.442695
  %v488 = vpow.pop %v487
  %v489 = vmul.f32 %v475, 1.442695
  %v490 = vpow.pop %v489
  %v491 = vmul.f32 %v476, 1.442695
  %v492 = vpow.pop %v491
  %v493 = vsel %vm444, %v478, 0.0
  %494 = vadd.xlane.f32.xlu0 %v493
  %v495 = vpop.xlane.xlu0 %494
  %v496 = vsel %vm444, %v480, 0.0
  %497 = vadd.xlane.f32.xlu0 %v496
  %v498 = vpop.xlane.xlu0 %497
  %v499 = vsel %vm444, %v482, 0.0
  %500 = vadd.xlane.f32.xlu0 %v499
  %v501 = vpop.xlane.xlu0 %500
  %v502 = vsel %vm444, %v484, 0.0
  %503 = vadd.xlane.f32.xlu0 %v502
  %v504 = vpop.xlane.xlu0 %503
  %v505 = vsel %vm444, %v486, 0.0
  %506 = vadd.xlane.f32.xlu0 %v505
  %v507 = vpop.xlane.xlu0 %506
  %v508 = vsel %vm444, %v488, 0.0
  %509 = vadd.xlane.f32.xlu0 %v508
  %v510 = vpop.xlane.xlu0 %509
  %v511 = vsel %vm444, %v490, 0.0
  %512 = vadd.xlane.f32.xlu0 %v511
  %v513 = vpop.xlane.xlu0 %512
  %v514 = vsel %vm444, %v492, 0.0
  %515 = vadd.xlane.f32.xlu0 %v514
  %v516 = vpop.xlane.xlu0 %515
  %v517 = vrcp.pop %v495
  %v518 = vrcp.pop %v498
  %v519 = vrcp.pop %v501
  %v520 = vrcp.pop %v504
  %v521 = vrcp.pop %v507
  %v522 = vrcp.pop %v510
  %v523 = vrcp.pop %v513
  %v524 = vrcp.pop %v516
  %v525 = vmul.f32 %v517, 0.25
  %v526 = vmul.f32 %v518, 0.25
  %v527 = vmul.f32 %v519, 0.25
  %v528 = vmul.f32 %v520, 0.25
  %v529 = vmul.f32 %v521, 0.25
  %v530 = vmul.f32 %v522, 0.25
  %v531 = vmul.f32 %v523, 0.25
  %v532 = vmul.f32 %v524, 0.25
  %v533 = vmul.f32 %v478, %v525
  %v534 = vmul.f32 %v480, %v526
  %v535 = vmul.f32 %v482, %v527
  %v536 = vmul.f32 %v484, %v528
  %v537 = vmul.f32 %v486, %v529
  %v538 = vmul.f32 %v488, %v530
  %v539 = vmul.f32 %v490, %v531
  %v540 = vmul.f32 %v492, %v532
  %v541 = vpack.c.bf16 %v534, %v533
  %v542 = vpack.c.bf16 %v536, %v535
  %v543 = vpack.c.bf16 %v538, %v537
  %v544 = vpack.c.bf16 %v540, %v539
  %v546 = vsel %vm444, %v541, 0
  %v549 = vsel %vm444, %v542, 0
  %v552 = vsel %vm444, %v543, 0
  %v555 = vsel %vm444, %v544, 0
  %557 = vmatprep.subr.bf16.mxu0 0
  %558 = vmatpush1.bf16.msra.mxu0 %v195
  %559 = vmatprep.subr.bf16.mxu0 0
  %560 = vmatpush1.bf16.msra.mxu0 0
  %561 = vmatprep.subr.bf16.mxu0 0
  %562 = vmatpush1.bf16.msra.mxu0 0
  %563 = vmatprep.subr.bf16.mxu0 0
  %564 = vmatpush1.bf16.msra.mxu0 0
  %565 = vmatprep.subr.bf16.mxu0 0
  %566 = vmatpush1.bf16.msra.mxu0 0
  %567 = vmatprep.subr.bf16.mxu0 0
  %568 = vmatpush1.bf16.msra.mxu0 0
  %569 = vmatprep.subr.bf16.mxu0 0
  %570 = vmatpush1.bf16.msra.mxu0 0
  %571 = vmatprep.subr.bf16.mxu0 0
  %572 = vmatpush1.bf16.msra.mxu0 0
  %573 = vmatprep.subr.bf16.mxu0 0
  %574 = vmatpush1.bf16.msra.mxu0 0
  %575 = vmatprep.subr.bf16.mxu0 0
  %576 = vmatpush1.bf16.msra.mxu0 0
  %577 = vmatprep.subr.bf16.mxu0 0
  %578 = vmatpush1.bf16.msra.mxu0 0
  %579 = vmatprep.subr.bf16.mxu0 0
  %580 = vmatpush1.bf16.msra.mxu0 0
  %581 = vmatprep.subr.bf16.mxu0 0
  %582 = vmatpush1.bf16.msra.mxu0 0
  %583 = vmatprep.subr.bf16.mxu0 0
  %584 = vmatpush1.bf16.msra.mxu0 0
  %585 = vmatprep.subr.bf16.mxu0 0
  %586 = vmatpush1.bf16.msra.mxu0 0
  %587 = vmatprep.subr.bf16.mxu0 0
  %588 = vmatpush1.bf16.msra.mxu0 0
  %589 = vmatprep.mubr.bf16.mxu0 0
  %590 = vmatmul.mubr.bf16.gmra.mrb[0].mxu0 %v546
  %v591 = vpop.f32.mrb[0].mxu0
  %v592 = vadd.f32 0.0, %v591
  %v593 = vpop.f32.mrb[0].mxu0
  %v594 = vpop.f32.mrb[0].mxu0
  %v595 = vadd.f32 0.0, %v594
  %v596 = vpop.f32.mrb[0].mxu0
  %597 = vmatprep.mubr.bf16.mxu0 0
  %598 = vmatmul.mubr.bf16.gmra.mrb[0].mxu0 %v549
  %v599 = vpop.f32.mrb[0].mxu0
  %v600 = vadd.f32 0.0, %v599
  %v601 = vpop.f32.mrb[0].mxu0
  %v602 = vpop.f32.mrb[0].mxu0
  %v603 = vadd.f32 0.0, %v602
  %v604 = vpop.f32.mrb[0].mxu0
  %605 = vmatprep.mubr.bf16.mxu0 0
  %606 = vmatmul.mubr.bf16.gmra.mrb[0].mxu0 %v552
  %v607 = vpop.f32.mrb[0].mxu0
  %v608 = vadd.f32 0.0, %v607
  %v609 = vpop.f32.mrb[0].mxu0
  %v610 = vpop.f32.mrb[0].mxu0
  %v611 = vadd.f32 0.0, %v610
  %v612 = vpop.f32.mrb[0].mxu0
  %613 = vmatprep.mubr.bf16.mxu0 0
  %614 = vmatmul.mubr.bf16.gmra.mrb[0].mxu0 %v555
  %v615 = vpop.f32.mrb[0].mxu0
  %v616 = vadd.f32 0.0, %v615
  %v617 = vpop.f32.mrb[0].mxu0
  %v618 = vpop.f32.mrb[0].mxu0
  %v619 = vadd.f32 0.0, %v618
  %v620 = vpop.f32.mrb[0].mxu0
  %621 = vdwg.mxu0
  %624 = vrot.lane.b32.xlu0 %v600, 96
  %v625 = vpop.permute.xlu0 %624
  %626 = vrot.lane.b32.xlu0 %v603, 96
  %v627 = vpop.permute.xlu0 %626
  %v630 = vadd.f32 %v592, %v625
  %v631 = vadd.f32 %v595, %v627
  %634 = vrot.lane.b32.xlu0 %v608, 64
  %v635 = vpop.permute.xlu0 %634
  %636 = vrot.lane.b32.xlu0 %v611, 64
  %v637 = vpop.permute.xlu0 %636
  %v640 = vadd.f32 %v630, %v635
  %v641 = vadd.f32 %v631, %v637
  %644 = vrot.lane.b32.xlu0 %v616, 32
  %v645 = vpop.permute.xlu0 %644
  %646 = vrot.lane.b32.xlu0 %v619, 32
  %v647 = vpop.permute.xlu0 %646
  %v650 = vadd.f32 %v640, %v645
  %v651 = vadd.f32 %v641, %v647
  %v652 = vld [vmem:[%s5] sm:$0x1]
  %v654 = vlaneseq
  %v655 = vshrl.u32 %v654, 7
  %v656 = vsub.s32 0, %v655
  %v657 = vrot.slane %v652, %v656
  %v659 = vadd.f32 %v650, %v657
  %v660 = vadd.f32 %v651, %v657
  %v661 = vld [vmem:[%s6] sm:$0x1]
  %v662 = vld [vmem:[%s7] sm:$0x1]
  %vm663 = vcmask 261120
  %v664 = vsel %vm663, %v659, 0.0
  %665 = vadd.xlane.f32.xlu0 %v664
  %v666 = vpop.xlane.xlu0 %665
  %v667 = vsel %vm663, %v660, 0.0
  %668 = vadd.xlane.f32.xlu0 %v667
  %v669 = vpop.xlane.xlu0 %668
  %v670 = vrcp.pop 32.0
  %v671 = vmul.f32 %v666, %v670
  %v672 = vmul.f32 %v669, %v670
  %v673 = vsub.f32 %v659, %v671
  %v674 = vsub.f32 %v660, %v672
  %v675 = vmul.f32 %v673, %v673
  %v676 = vmul.f32 %v674, %v674
  %v677 = vsel %vm663, %v675, 0.0
  %678 = vadd.xlane.f32.xlu0 %v677
  %v679 = vpop.xlane.xlu0 %678
  %v680 = vsel %vm663, %v676, 0.0
  %681 = vadd.xlane.f32.xlu0 %v680
  %v682 = vpop.xlane.xlu0 %681
  %v683 = vmul.f32 %v679, %v670
  %v684 = vmul.f32 %v682, %v670
  %v685 = vadd.f32 %v683, 1e-05
  %v686 = vadd.f32 %v684, 1e-05
  %v687 = vrsqrt.pop %v685
  %v688 = vrsqrt.pop %v686
  %v689 = vmul.f32 %v673, %v687
  %v690 = vmul.f32 %v674, %v688
  %v692 = vlaneseq
  %v693 = vshrl.u32 %v692, 7
  %v694 = vsub.s32 0, %v693
  %v695 = vrot.slane %v661, %v694
  %v697 = vmul.f32 %v689, %v695
  %v698 = vmul.f32 %v690, %v695
  %v700 = vlaneseq
  %v701 = vshrl.u32 %v700, 7
  %v702 = vsub.s32 0, %v701
  %v703 = vrot.slane %v662, %v702
  %v705 = vadd.f32 %v697, %v703
  %v706 = vadd.f32 %v698, %v703
  %v707 = vadd.f32 %v705, %v144
  %v708 = vadd.f32 %v706, %v147
  %v709 = vpack.c.bf16 %v708, %v707
  %v710 = vld [vmem:[%s10] sm:$0xf]
  %v711 = vld [vmem:[%s10 + $0x4] sm:$0xf]
  %v712 = vld [vmem:[%s10 + $0x8] sm:$0xf]
  %v713 = vld [vmem:[%s10 + $0xc] sm:$0xf]
  %v718 = vunpack.c.l.b16 %v710
  %v719 = vunpack.c.l.b16 %v711
  %v720 = vunpack.c.l.b16 %v712
  %v721 = vunpack.c.l.b16 %v713
  %v722 = vpack.c.b16 %v719, %v718
  %v723 = vpack.c.b16 %v721, %v720
  %v727 = vsel %vm663, %v709, 0
  %729 = vmatprep.subr.bf16.mxu0 0
  %730 = vmatpush1.bf16.msra.mxu0 %v722
  %731 = vmatprep.subr.bf16.mxu0 0
  %732 = vmatpush1.bf16.msra.mxu0 %v723
  %733 = vmatprep.subr.bf16.mxu0 0
  %734 = vmatpush1.bf16.msra.mxu0 0
  %735 = vmatprep.subr.bf16.mxu0 0
  %736 = vmatpush1.bf16.msra.mxu0 0
  %737 = vmatprep.subr.bf16.mxu0 0
  %738 = vmatpush1.bf16.msra.mxu0 0
  %739 = vmatprep.subr.bf16.mxu0 0
  %740 = vmatpush1.bf16.msra.mxu0 0
  %741 = vmatprep.subr.bf16.mxu0 0
  %742 = vmatpush1.bf16.msra.mxu0 0
  %743 = vmatprep.subr.bf16.mxu0 0
  %744 = vmatpush1.bf16.msra.mxu0 0
  %745 = vmatprep.subr.bf16.mxu0 0
  %746 = vmatpush1.bf16.msra.mxu0 0
  %747 = vmatprep.subr.bf16.mxu0 0
  %748 = vmatpush1.bf16.msra.mxu0 0
  %749 = vmatprep.subr.bf16.mxu0 0
  %750 = vmatpush1.bf16.msra.mxu0 0
  %751 = vmatprep.subr.bf16.mxu0 0
  %752 = vmatpush1.bf16.msra.mxu0 0
  %753 = vmatprep.subr.bf16.mxu0 0
  %754 = vmatpush1.bf16.msra.mxu0 0
  %755 = vmatprep.subr.bf16.mxu0 0
  %756 = vmatpush1.bf16.msra.mxu0 0
  %757 = vmatprep.subr.bf16.mxu0 0
  %758 = vmatpush1.bf16.msra.mxu0 0
  %759 = vmatprep.subr.bf16.mxu0 0
  %760 = vmatpush1.bf16.msra.mxu0 0
  %761 = vmatprep.mubr.bf16.mxu0 0
  %762 = vmatmul.mubr.bf16.gmra.mrb[0].mxu0 %v727
  %v763 = vpop.f32.mrb[0].mxu0
  %v764 = vadd.f32 0.0, %v763
  %v765 = vpop.f32.mrb[0].mxu0
  %v766 = vpop.f32.mrb[0].mxu0
  %v767 = vadd.f32 0.0, %v766
  %v768 = vpop.f32.mrb[0].mxu0
  %769 = vdwg.mxu0
  %v770 = vpack.c.bf16 %v767, %v764
  %v771 = vld [vmem:[%s11] sm:$0xf]
  %v772 = vld [vmem:[%s11 + $0x4] sm:$0xf]
  %v773 = vld [vmem:[%s11 + $0x8] sm:$0xf]
  %v774 = vld [vmem:[%s11 + $0xc] sm:$0xf]
  %v775 = vld [vmem:[%s11 + $0x10] sm:$0xf]
  %v776 = vld [vmem:[%s11 + $0x14] sm:$0xf]
  %v777 = vld [vmem:[%s11 + $0x18] sm:$0xf]
  %v778 = vld [vmem:[%s11 + $0x1c] sm:$0xf]
  %v779 = vld [vmem:[%s11 + $0x20] sm:$0xf]
  %v780 = vld [vmem:[%s11 + $0x24] sm:$0xf]
  %v781 = vld [vmem:[%s11 + $0x28] sm:$0xf]
  %v782 = vld [vmem:[%s11 + $0x2c] sm:$0xf]
  %v783 = vld [vmem:[%s11 + $0x30] sm:$0xf]
  %v784 = vld [vmem:[%s11 + $0x34] sm:$0xf]
  %v785 = vld [vmem:[%s11 + $0x38] sm:$0xf]
  %v786 = vld [vmem:[%s11 + $0x3c] sm:$0xf]
  %v803 = vunpack.c.l.b16 %v771
  %v804 = vunpack.c.l.b16 %v772
  %v805 = vunpack.c.l.b16 %v773
  %v806 = vunpack.c.l.b16 %v774
  %v807 = vunpack.c.l.b16 %v775
  %v808 = vunpack.c.l.b16 %v776
  %v809 = vunpack.c.l.b16 %v777
  %v810 = vunpack.c.l.b16 %v778
  %v811 = vunpack.c.l.b16 %v779
  %v812 = vunpack.c.l.b16 %v780
  %v813 = vunpack.c.l.b16 %v781
  %v814 = vunpack.c.l.b16 %v782
  %v815 = vunpack.c.l.b16 %v783
  %v816 = vunpack.c.l.b16 %v784
  %v817 = vunpack.c.l.b16 %v785
  %v818 = vunpack.c.l.b16 %v786
  %v819 = vpack.c.b16 %v804, %v803
  %v820 = vpack.c.b16 %v806, %v805
  %v821 = vpack.c.b16 %v808, %v807
  %v822 = vpack.c.b16 %v810, %v809
  %v823 = vpack.c.b16 %v812, %v811
  %v824 = vpack.c.b16 %v814, %v813
  %v825 = vpack.c.b16 %v816, %v815
  %v826 = vpack.c.b16 %v818, %v817
  %835 = vmatprep.subr.bf16.mxu0 0
  %836 = vmatpush1.bf16.msra.mxu0 %v819
  %837 = vmatprep.subr.bf16.mxu0 0
  %838 = vmatpush1.bf16.msra.mxu0 %v820
  %839 = vmatprep.subr.bf16.mxu0 0
  %840 = vmatpush1.bf16.msra.mxu0 %v821
  %841 = vmatprep.subr.bf16.mxu0 0
  %842 = vmatpush1.bf16.msra.mxu0 %v822
  %843 = vmatprep.subr.bf16.mxu0 0
  %844 = vmatpush1.bf16.msra.mxu0 %v823
  %845 = vmatprep.subr.bf16.mxu0 0
  %846 = vmatpush1.bf16.msra.mxu0 %v824
  %847 = vmatprep.subr.bf16.mxu0 0
  %848 = vmatpush1.bf16.msra.mxu0 %v825
  %849 = vmatprep.subr.bf16.mxu0 0
  %850 = vmatpush1.bf16.msra.mxu0 %v826
  %851 = vmatprep.subr.bf16.mxu0 0
  %852 = vmatpush1.bf16.msra.mxu0 0
  %853 = vmatprep.subr.bf16.mxu0 0
  %854 = vmatpush1.bf16.msra.mxu0 0
  %855 = vmatprep.subr.bf16.mxu0 0
  %856 = vmatpush1.bf16.msra.mxu0 0
  %857 = vmatprep.subr.bf16.mxu0 0
  %858 = vmatpush1.bf16.msra.mxu0 0
  %859 = vmatprep.subr.bf16.mxu0 0
  %860 = vmatpush1.bf16.msra.mxu0 0
  %861 = vmatprep.subr.bf16.mxu0 0
  %862 = vmatpush1.bf16.msra.mxu0 0
  %863 = vmatprep.subr.bf16.mxu0 0
  %864 = vmatpush1.bf16.msra.mxu0 0
  %865 = vmatprep.subr.bf16.mxu0 0
  %866 = vmatpush1.bf16.msra.mxu0 0
  %867 = vmatprep.mubr.bf16.mxu0 0
  %868 = vmatmul.mubr.bf16.gmra.mrb[0].mxu0 %v770
  %v869 = vpop.f32.mrb[0].mxu0
  %v870 = vadd.f32 0.0, %v869
  %v871 = vpop.f32.mrb[0].mxu0
  %v872 = vpop.f32.mrb[0].mxu0
  %v873 = vadd.f32 0.0, %v872
  %v874 = vpop.f32.mrb[0].mxu0
  %875 = vdwg.mxu0
  %v876 = vld [vmem:[%s12] sm:$0x3]
  %877 = vmatprep.subr.bf16.mxu0 0
  %878 = vmatpush1.bf16.xpose.msra.mxu0 %v770
  %879 = vmatprep.subr.bf16.mxu0 0
  %880 = vmatpush1.bf16.xpose.msra.mxu0 0
  %881 = vmatprep.subr.bf16.mxu0 0
  %882 = vmatpush1.bf16.xpose.msra.mxu0 0
  %883 = vmatprep.subr.bf16.mxu0 0
  %884 = vmatpush1.bf16.xpose.msra.mxu0 0
  %885 = vmatprep.subr.bf16.mxu0 0
  %886 = vmatpush1.bf16.xpose.msra.mxu0 0
  %887 = vmatprep.subr.bf16.mxu0 0
  %888 = vmatpush1.bf16.xpose.msra.mxu0 0
  %889 = vmatprep.subr.bf16.mxu0 0
  %890 = vmatpush1.bf16.xpose.msra.mxu0 0
  %891 = vmatprep.subr.bf16.mxu0 0
  %892 = vmatpush1.bf16.xpose.msra.mxu0 0
  %893 = vmatprep.subr.bf16.mxu0 0
  %894 = vmatpush1.bf16.xpose.msra.mxu0 0
  %895 = vmatprep.subr.bf16.mxu0 0
  %896 = vmatpush1.bf16.xpose.msra.mxu0 0
  %897 = vmatprep.subr.bf16.mxu0 0
  %898 = vmatpush1.bf16.xpose.msra.mxu0 0
  %899 = vmatprep.subr.bf16.mxu0 0
  %900 = vmatpush1.bf16.xpose.msra.mxu0 0
  %901 = vmatprep.subr.bf16.mxu0 0
  %902 = vmatpush1.bf16.xpose.msra.mxu0 0
  %903 = vmatprep.subr.bf16.mxu0 0
  %904 = vmatpush1.bf16.xpose.msra.mxu0 0
  %905 = vmatprep.subr.bf16.mxu0 0
  %906 = vmatpush1.bf16.xpose.msra.mxu0 0
  %907 = vmatprep.subr.bf16.mxu0 0
  %908 = vmatpush1.bf16.xpose.msra.mxu0 0
  %909 = vmatprep.mubr.bf16.mxu0 0
  %910 = vmatmul.mubr.bf16.gmra.mrb[0].mxu0 %v876
  %v911 = vpop.f32.mrb[0].mxu0
  %v912 = vadd.f32 0.0, %v911
  %v913 = vpop.f32.mrb[0].mxu0
  %v914 = vpop.f32.mrb[0].mxu0
  %v915 = vpop.f32.mrb[0].mxu0
  %916 = vdwg.mxu0
  %918 = vset.pattern.permute.xlu0 0
  %919 = vperm.xlu0 %918, %v870
  %v920 = vpop.permute.xlu0 %919
  %923 = vset.pattern.permute.xlu0 0
  %924 = vperm.xlu0 %923, %v873
  %v925 = vpop.permute.xlu0 %924
  %v927 = vlaneseq
  %v928 = vshrl.u32 %v927, 7
  %v929 = vsub.s32 0, %v928
  %v930 = vrot.slane %v912, %v929
  %v931 = vadd.f32 %v920, %v930
  %v932 = vadd.f32 %v925, %v930
  %933 = vset.pattern.permute.xlu0 1
  %934 = vperm.xlu0 %933, %v870
  %v935 = vpop.permute.xlu0 %934
  %937 = vset.pattern.permute.xlu0 1
  %938 = vperm.xlu0 %937, %v873
  %v939 = vpop.permute.xlu0 %938
  %v941 = vlaneseq
  %v942 = vshrl.u32 %v941, 7
  %v943 = vsub.s32 1, %v942
  %v944 = vrot.slane %v912, %v943
  %v945 = vadd.f32 %v935, %v944
  %v946 = vadd.f32 %v939, %v944
  %947 = vset.pattern.permute.xlu0 2
  %948 = vperm.xlu0 %947, %v870
  %v949 = vpop.permute.xlu0 %948
  %951 = vset.pattern.permute.xlu0 2
  %952 = vperm.xlu0 %951, %v873
  %v953 = vpop.permute.xlu0 %952
  %v955 = vlaneseq
  %v956 = vshrl.u32 %v955, 7
  %v957 = vsub.s32 2, %v956
  %v958 = vrot.slane %v912, %v957
  %v959 = vadd.f32 %v949, %v958
  %v960 = vadd.f32 %v953, %v958
  %961 = vset.pattern.permute.xlu0 3
  %962 = vperm.xlu0 %961, %v870
  %v963 = vpop.permute.xlu0 %962
  %965 = vset.pattern.permute.xlu0 3
  %966 = vperm.xlu0 %965, %v873
  %v967 = vpop.permute.xlu0 %966
  %v969 = vlaneseq
  %v970 = vshrl.u32 %v969, 7
  %v971 = vsub.s32 3, %v970
  %v972 = vrot.slane %v912, %v971
  %v973 = vadd.f32 %v963, %v972
  %v974 = vadd.f32 %v967, %v972
  %v975 = vmul.f32 %v931, 0.2
  %v976 = vmul.f32 %v932, 0.2
  %v977 = vmul.f32 %v945, 0.2
  %v978 = vmul.f32 %v946, 0.2
  %v979 = vmul.f32 %v959, 0.2
  %v980 = vmul.f32 %v960, 0.2
  %v981 = vmul.f32 %v973, 0.2
  %v982 = vmul.f32 %v974, 0.2
  %v983 = vmax.f32 %v931, %v975
  %v984 = vmax.f32 %v932, %v976
  %v985 = vmax.f32 %v945, %v977
  %v986 = vmax.f32 %v946, %v978
  %v987 = vmax.f32 %v959, %v979
  %v988 = vmax.f32 %v960, %v980
  %v989 = vmax.f32 %v973, %v981
  %v990 = vmax.f32 %v974, %v982
  %v991 = vsel %vm434, %v983, -1e+30
  %v992 = vsel %vm435, %v984, -1e+30
  %v993 = vsel %vm434, %v985, -1e+30
  %v994 = vsel %vm435, %v986, -1e+30
  %v995 = vsel %vm434, %v987, -1e+30
  %v996 = vsel %vm435, %v988, -1e+30
  %v997 = vsel %vm434, %v989, -1e+30
  %v998 = vsel %vm435, %v990, -1e+30
  %v999 = vsel %vm444, %v991, -inf
  %1000 = vmax.xlane.f32.xlu0 %v999
  %v1001 = vpop.xlane.xlu0 %1000
  %v1002 = vsel %vm444, %v992, -inf
  %1003 = vmax.xlane.f32.xlu0 %v1002
  %v1004 = vpop.xlane.xlu0 %1003
  %v1005 = vsel %vm444, %v993, -inf
  %1006 = vmax.xlane.f32.xlu0 %v1005
  %v1007 = vpop.xlane.xlu0 %1006
  %v1008 = vsel %vm444, %v994, -inf
  %1009 = vmax.xlane.f32.xlu0 %v1008
  %v1010 = vpop.xlane.xlu0 %1009
  %v1011 = vsel %vm444, %v995, -inf
  %1012 = vmax.xlane.f32.xlu0 %v1011
  %v1013 = vpop.xlane.xlu0 %1012
  %v1014 = vsel %vm444, %v996, -inf
  %1015 = vmax.xlane.f32.xlu0 %v1014
  %v1016 = vpop.xlane.xlu0 %1015
  %v1017 = vsel %vm444, %v997, -inf
  %1018 = vmax.xlane.f32.xlu0 %v1017
  %v1019 = vpop.xlane.xlu0 %1018
  %v1020 = vsel %vm444, %v998, -inf
  %1021 = vmax.xlane.f32.xlu0 %v1020
  %v1022 = vpop.xlane.xlu0 %1021
  %v1023 = vsub.f32 %v991, %v1001
  %v1024 = vsub.f32 %v992, %v1004
  %v1025 = vsub.f32 %v993, %v1007
  %v1026 = vsub.f32 %v994, %v1010
  %v1027 = vsub.f32 %v995, %v1013
  %v1028 = vsub.f32 %v996, %v1016
  %v1029 = vsub.f32 %v997, %v1019
  %v1030 = vsub.f32 %v998, %v1022
  %v1031 = vmul.f32 %v1023, 1.442695
  %v1032 = vpow.pop %v1031
  %v1033 = vmul.f32 %v1024, 1.442695
  %v1034 = vpow.pop %v1033
  %v1035 = vmul.f32 %v1025, 1.442695
  %v1036 = vpow.pop %v1035
  %v1037 = vmul.f32 %v1026, 1.442695
  %v1038 = vpow.pop %v1037
  %v1039 = vmul.f32 %v1027, 1.442695
  %v1040 = vpow.pop %v1039
  %v1041 = vmul.f32 %v1028, 1.442695
  %v1042 = vpow.pop %v1041
  %v1043 = vmul.f32 %v1029, 1.442695
  %v1044 = vpow.pop %v1043
  %v1045 = vmul.f32 %v1030, 1.442695
  %v1046 = vpow.pop %v1045
  %v1047 = vsel %vm444, %v1032, 0.0
  %1048 = vadd.xlane.f32.xlu0 %v1047
  %v1049 = vpop.xlane.xlu0 %1048
  %v1050 = vsel %vm444, %v1034, 0.0
  %1051 = vadd.xlane.f32.xlu0 %v1050
  %v1052 = vpop.xlane.xlu0 %1051
  %v1053 = vsel %vm444, %v1036, 0.0
  %1054 = vadd.xlane.f32.xlu0 %v1053
  %v1055 = vpop.xlane.xlu0 %1054
  %v1056 = vsel %vm444, %v1038, 0.0
  %1057 = vadd.xlane.f32.xlu0 %v1056
  %v1058 = vpop.xlane.xlu0 %1057
  %v1059 = vsel %vm444, %v1040, 0.0
  %1060 = vadd.xlane.f32.xlu0 %v1059
  %v1061 = vpop.xlane.xlu0 %1060
  %v1062 = vsel %vm444, %v1042, 0.0
  %1063 = vadd.xlane.f32.xlu0 %v1062
  %v1064 = vpop.xlane.xlu0 %1063
  %v1065 = vsel %vm444, %v1044, 0.0
  %1066 = vadd.xlane.f32.xlu0 %v1065
  %v1067 = vpop.xlane.xlu0 %1066
  %v1068 = vsel %vm444, %v1046, 0.0
  %1069 = vadd.xlane.f32.xlu0 %v1068
  %v1070 = vpop.xlane.xlu0 %1069
  %v1071 = vrcp.pop %v1049
  %v1072 = vrcp.pop %v1052
  %v1073 = vrcp.pop %v1055
  %v1074 = vrcp.pop %v1058
  %v1075 = vrcp.pop %v1061
  %v1076 = vrcp.pop %v1064
  %v1077 = vrcp.pop %v1067
  %v1078 = vrcp.pop %v1070
  %v1079 = vmul.f32 %v1071, 0.25
  %v1080 = vmul.f32 %v1072, 0.25
  %v1081 = vmul.f32 %v1073, 0.25
  %v1082 = vmul.f32 %v1074, 0.25
  %v1083 = vmul.f32 %v1075, 0.25
  %v1084 = vmul.f32 %v1076, 0.25
  %v1085 = vmul.f32 %v1077, 0.25
  %v1086 = vmul.f32 %v1078, 0.25
  %v1087 = vmul.f32 %v1032, %v1079
  %v1088 = vmul.f32 %v1034, %v1080
  %v1089 = vmul.f32 %v1036, %v1081
  %v1090 = vmul.f32 %v1038, %v1082
  %v1091 = vmul.f32 %v1040, %v1083
  %v1092 = vmul.f32 %v1042, %v1084
  %v1093 = vmul.f32 %v1044, %v1085
  %v1094 = vmul.f32 %v1046, %v1086
  %v1095 = vpack.c.bf16 %v1088, %v1087
  %v1096 = vpack.c.bf16 %v1090, %v1089
  %v1097 = vpack.c.bf16 %v1092, %v1091
  %v1098 = vpack.c.bf16 %v1094, %v1093
  %v1100 = vsel %vm444, %v1095, 0
  %v1103 = vsel %vm444, %v1096, 0
  %v1106 = vsel %vm444, %v1097, 0
  %v1109 = vsel %vm444, %v1098, 0
  %1111 = vmatprep.subr.bf16.mxu0 0
  %1112 = vmatpush1.bf16.msra.mxu0 %v770
  %1113 = vmatprep.subr.bf16.mxu0 0
  %1114 = vmatpush1.bf16.msra.mxu0 0
  %1115 = vmatprep.subr.bf16.mxu0 0
  %1116 = vmatpush1.bf16.msra.mxu0 0
  %1117 = vmatprep.subr.bf16.mxu0 0
  %1118 = vmatpush1.bf16.msra.mxu0 0
  %1119 = vmatprep.subr.bf16.mxu0 0
  %1120 = vmatpush1.bf16.msra.mxu0 0
  %1121 = vmatprep.subr.bf16.mxu0 0
  %1122 = vmatpush1.bf16.msra.mxu0 0
  %1123 = vmatprep.subr.bf16.mxu0 0
  %1124 = vmatpush1.bf16.msra.mxu0 0
  %1125 = vmatprep.subr.bf16.mxu0 0
  %1126 = vmatpush1.bf16.msra.mxu0 0
  %1127 = vmatprep.subr.bf16.mxu0 0
  %1128 = vmatpush1.bf16.msra.mxu0 0
  %1129 = vmatprep.subr.bf16.mxu0 0
  %1130 = vmatpush1.bf16.msra.mxu0 0
  %1131 = vmatprep.subr.bf16.mxu0 0
  %1132 = vmatpush1.bf16.msra.mxu0 0
  %1133 = vmatprep.subr.bf16.mxu0 0
  %1134 = vmatpush1.bf16.msra.mxu0 0
  %1135 = vmatprep.subr.bf16.mxu0 0
  %1136 = vmatpush1.bf16.msra.mxu0 0
  %1137 = vmatprep.subr.bf16.mxu0 0
  %1138 = vmatpush1.bf16.msra.mxu0 0
  %1139 = vmatprep.subr.bf16.mxu0 0
  %1140 = vmatpush1.bf16.msra.mxu0 0
  %1141 = vmatprep.subr.bf16.mxu0 0
  %1142 = vmatpush1.bf16.msra.mxu0 0
  %1143 = vmatprep.mubr.bf16.mxu0 0
  %1144 = vmatmul.mubr.bf16.gmra.mrb[0].mxu0 %v1100
  %v1145 = vpop.f32.mrb[0].mxu0
  %v1146 = vadd.f32 0.0, %v1145
  %v1147 = vpop.f32.mrb[0].mxu0
  %v1148 = vpop.f32.mrb[0].mxu0
  %v1149 = vadd.f32 0.0, %v1148
  %v1150 = vpop.f32.mrb[0].mxu0
  %1151 = vmatprep.mubr.bf16.mxu0 0
  %1152 = vmatmul.mubr.bf16.gmra.mrb[0].mxu0 %v1103
  %v1153 = vpop.f32.mrb[0].mxu0
  %v1154 = vadd.f32 0.0, %v1153
  %v1155 = vpop.f32.mrb[0].mxu0
  %v1156 = vpop.f32.mrb[0].mxu0
  %v1157 = vadd.f32 0.0, %v1156
  %v1158 = vpop.f32.mrb[0].mxu0
  %1159 = vmatprep.mubr.bf16.mxu0 0
  %1160 = vmatmul.mubr.bf16.gmra.mrb[0].mxu0 %v1106
  %v1161 = vpop.f32.mrb[0].mxu0
  %v1162 = vadd.f32 0.0, %v1161
  %v1163 = vpop.f32.mrb[0].mxu0
  %v1164 = vpop.f32.mrb[0].mxu0
  %v1165 = vadd.f32 0.0, %v1164
  %v1166 = vpop.f32.mrb[0].mxu0
  %1167 = vmatprep.mubr.bf16.mxu0 0
  %1168 = vmatmul.mubr.bf16.gmra.mrb[0].mxu0 %v1109
  %v1169 = vpop.f32.mrb[0].mxu0
  %v1170 = vadd.f32 0.0, %v1169
  %v1171 = vpop.f32.mrb[0].mxu0
  %v1172 = vpop.f32.mrb[0].mxu0
  %v1173 = vadd.f32 0.0, %v1172
  %v1174 = vpop.f32.mrb[0].mxu0
  %1175 = vdwg.mxu0
  %1178 = vrot.lane.b32.xlu0 %v1154, 96
  %v1179 = vpop.permute.xlu0 %1178
  %1180 = vrot.lane.b32.xlu0 %v1157, 96
  %v1181 = vpop.permute.xlu0 %1180
  %v1184 = vadd.f32 %v1146, %v1179
  %v1185 = vadd.f32 %v1149, %v1181
  %1188 = vrot.lane.b32.xlu0 %v1162, 64
  %v1189 = vpop.permute.xlu0 %1188
  %1190 = vrot.lane.b32.xlu0 %v1165, 64
  %v1191 = vpop.permute.xlu0 %1190
  %v1194 = vadd.f32 %v1184, %v1189
  %v1195 = vadd.f32 %v1185, %v1191
  %1198 = vrot.lane.b32.xlu0 %v1170, 32
  %v1199 = vpop.permute.xlu0 %1198
  %1200 = vrot.lane.b32.xlu0 %v1173, 32
  %v1201 = vpop.permute.xlu0 %1200
  %v1204 = vadd.f32 %v1194, %v1199
  %v1205 = vadd.f32 %v1195, %v1201
  %v1206 = vld [vmem:[%s13] sm:$0x1]
  %v1208 = vlaneseq
  %v1209 = vshrl.u32 %v1208, 7
  %v1210 = vsub.s32 0, %v1209
  %v1211 = vrot.slane %v1206, %v1210
  %v1213 = vadd.f32 %v1204, %v1211
  %v1214 = vadd.f32 %v1205, %v1211
  %v1215 = vld [vmem:[%s14] sm:$0x1]
  %v1216 = vld [vmem:[%s15] sm:$0x1]
  %v1217 = vsel %vm663, %v1213, 0.0
  %1218 = vadd.xlane.f32.xlu0 %v1217
  %v1219 = vpop.xlane.xlu0 %1218
  %v1220 = vsel %vm663, %v1214, 0.0
  %1221 = vadd.xlane.f32.xlu0 %v1220
  %v1222 = vpop.xlane.xlu0 %1221
  %v1223 = vmul.f32 %v1219, %v670
  %v1224 = vmul.f32 %v1222, %v670
  %v1225 = vsub.f32 %v1213, %v1223
  %v1226 = vsub.f32 %v1214, %v1224
  %v1227 = vmul.f32 %v1225, %v1225
  %v1228 = vmul.f32 %v1226, %v1226
  %v1229 = vsel %vm663, %v1227, 0.0
  %1230 = vadd.xlane.f32.xlu0 %v1229
  %v1231 = vpop.xlane.xlu0 %1230
  %v1232 = vsel %vm663, %v1228, 0.0
  %1233 = vadd.xlane.f32.xlu0 %v1232
  %v1234 = vpop.xlane.xlu0 %1233
  %v1235 = vmul.f32 %v1231, %v670
  %v1236 = vmul.f32 %v1234, %v670
  %v1237 = vadd.f32 %v1235, 1e-05
  %v1238 = vadd.f32 %v1236, 1e-05
  %v1239 = vrsqrt.pop %v1237
  %v1240 = vrsqrt.pop %v1238
  %v1241 = vmul.f32 %v1225, %v1239
  %v1242 = vmul.f32 %v1226, %v1240
  %v1244 = vlaneseq
  %v1245 = vshrl.u32 %v1244, 7
  %v1246 = vsub.s32 0, %v1245
  %v1247 = vrot.slane %v1215, %v1246
  %v1249 = vmul.f32 %v1241, %v1247
  %v1250 = vmul.f32 %v1242, %v1247
  %v1252 = vlaneseq
  %v1253 = vshrl.u32 %v1252, 7
  %v1254 = vsub.s32 0, %v1253
  %v1255 = vrot.slane %v1216, %v1254
  %v1257 = vadd.f32 %v1249, %v1255
  %v1258 = vadd.f32 %v1250, %v1255
  %v1259 = vadd.f32 %v1257, %v707
  %v1260 = vadd.f32 %v1258, %v708
  %v1261 = vpack.c.bf16 %v1260, %v1259
  %v1262 = vld [vmem:[%s16] sm:$0xf]
  %v1263 = vld [vmem:[%s16 + $0x4] sm:$0xf]
  %v1264 = vld [vmem:[%s16 + $0x8] sm:$0xf]
  %v1265 = vld [vmem:[%s16 + $0xc] sm:$0xf]
  %v1270 = vunpack.c.l.b16 %v1262
  %v1271 = vunpack.c.l.b16 %v1263
  %v1272 = vunpack.c.l.b16 %v1264
  %v1273 = vunpack.c.l.b16 %v1265
  %v1274 = vpack.c.b16 %v1271, %v1270
  %v1275 = vpack.c.b16 %v1273, %v1272
  %v1279 = vsel %vm663, %v1261, 0
  %1281 = vmatprep.subr.bf16.mxu0 0
  %1282 = vmatpush1.bf16.msra.mxu0 %v1274
  %1283 = vmatprep.subr.bf16.mxu0 0
  %1284 = vmatpush1.bf16.msra.mxu0 %v1275
  %1285 = vmatprep.subr.bf16.mxu0 0
  %1286 = vmatpush1.bf16.msra.mxu0 0
  %1287 = vmatprep.subr.bf16.mxu0 0
  %1288 = vmatpush1.bf16.msra.mxu0 0
  %1289 = vmatprep.subr.bf16.mxu0 0
  %1290 = vmatpush1.bf16.msra.mxu0 0
  %1291 = vmatprep.subr.bf16.mxu0 0
  %1292 = vmatpush1.bf16.msra.mxu0 0
  %1293 = vmatprep.subr.bf16.mxu0 0
  %1294 = vmatpush1.bf16.msra.mxu0 0
  %1295 = vmatprep.subr.bf16.mxu0 0
  %1296 = vmatpush1.bf16.msra.mxu0 0
  %1297 = vmatprep.subr.bf16.mxu0 0
  %1298 = vmatpush1.bf16.msra.mxu0 0
  %1299 = vmatprep.subr.bf16.mxu0 0
  %1300 = vmatpush1.bf16.msra.mxu0 0
  %1301 = vmatprep.subr.bf16.mxu0 0
  %1302 = vmatpush1.bf16.msra.mxu0 0
  %1303 = vmatprep.subr.bf16.mxu0 0
  %1304 = vmatpush1.bf16.msra.mxu0 0
  %1305 = vmatprep.subr.bf16.mxu0 0
  %1306 = vmatpush1.bf16.msra.mxu0 0
  %1307 = vmatprep.subr.bf16.mxu0 0
  %1308 = vmatpush1.bf16.msra.mxu0 0
  %1309 = vmatprep.subr.bf16.mxu0 0
  %1310 = vmatpush1.bf16.msra.mxu0 0
  %1311 = vmatprep.subr.bf16.mxu0 0
  %1312 = vmatpush1.bf16.msra.mxu0 0
  %1313 = vmatprep.mubr.bf16.mxu0 0
  %1314 = vmatmul.mubr.bf16.gmra.mrb[0].mxu0 %v1279
  %v1315 = vpop.f32.mrb[0].mxu0
  %v1316 = vadd.f32 0.0, %v1315
  %v1317 = vpop.f32.mrb[0].mxu0
  %v1318 = vpop.f32.mrb[0].mxu0
  %v1319 = vadd.f32 0.0, %v1318
  %v1320 = vpop.f32.mrb[0].mxu0
  %1321 = vdwg.mxu0
  %v1322 = vpack.c.bf16 %v1319, %v1316
  %v1323 = vld [vmem:[%s17] sm:$0xf]
  %v1324 = vld [vmem:[%s17 + $0x4] sm:$0xf]
  %v1327 = vunpack.c.l.b16 %v1323
  %v1328 = vunpack.c.l.b16 %v1324
  %v1329 = vpack.c.b16 %v1328, %v1327
  %v1332 = vsel %vm444, %v1322, 0
  %1334 = vmatprep.subr.bf16.mxu0 0
  %1335 = vmatpush1.bf16.msra.mxu0 %v1329
  %1336 = vmatprep.subr.bf16.mxu0 0
  %1337 = vmatpush1.bf16.msra.mxu0 0
  %1338 = vmatprep.subr.bf16.mxu0 0
  %1339 = vmatpush1.bf16.msra.mxu0 0
  %1340 = vmatprep.subr.bf16.mxu0 0
  %1341 = vmatpush1.bf16.msra.mxu0 0
  %1342 = vmatprep.subr.bf16.mxu0 0
  %1343 = vmatpush1.bf16.msra.mxu0 0
  %1344 = vmatprep.subr.bf16.mxu0 0
  %1345 = vmatpush1.bf16.msra.mxu0 0
  %1346 = vmatprep.subr.bf16.mxu0 0
  %1347 = vmatpush1.bf16.msra.mxu0 0
  %1348 = vmatprep.subr.bf16.mxu0 0
  %1349 = vmatpush1.bf16.msra.mxu0 0
  %1350 = vmatprep.subr.bf16.mxu0 0
  %1351 = vmatpush1.bf16.msra.mxu0 0
  %1352 = vmatprep.subr.bf16.mxu0 0
  %1353 = vmatpush1.bf16.msra.mxu0 0
  %1354 = vmatprep.subr.bf16.mxu0 0
  %1355 = vmatpush1.bf16.msra.mxu0 0
  %1356 = vmatprep.subr.bf16.mxu0 0
  %1357 = vmatpush1.bf16.msra.mxu0 0
  %1358 = vmatprep.subr.bf16.mxu0 0
  %1359 = vmatpush1.bf16.msra.mxu0 0
  %1360 = vmatprep.subr.bf16.mxu0 0
  %1361 = vmatpush1.bf16.msra.mxu0 0
  %1362 = vmatprep.subr.bf16.mxu0 0
  %1363 = vmatpush1.bf16.msra.mxu0 0
  %1364 = vmatprep.subr.bf16.mxu0 0
  %1365 = vmatpush1.bf16.msra.mxu0 0
  %1366 = vmatprep.mubr.bf16.mxu0 0
  %1367 = vmatmul.mubr.bf16.gmra.mrb[0].mxu0 %v1332
  %v1368 = vpop.f32.mrb[0].mxu0
  %v1369 = vadd.f32 0.0, %v1368
  %v1370 = vpop.f32.mrb[0].mxu0
  %v1371 = vpop.f32.mrb[0].mxu0
  %v1372 = vadd.f32 0.0, %v1371
  %v1373 = vpop.f32.mrb[0].mxu0
  %1374 = vdwg.mxu0
  %v1375 = vld [vmem:[%s18] sm:$0x1]
  %v1377 = vsel %vm444, %v1375, 0
  %1379 = vmatprep.subr.bf16.mxu0 0
  %1380 = vmatpush1.bf16.xpose.msra.mxu0 %v1332
  %1381 = vmatprep.subr.bf16.mxu0 0
  %1382 = vmatpush1.bf16.xpose.msra.mxu0 0
  %1383 = vmatprep.subr.bf16.mxu0 0
  %1384 = vmatpush1.bf16.xpose.msra.mxu0 0
  %1385 = vmatprep.subr.bf16.mxu0 0
  %1386 = vmatpush1.bf16.xpose.msra.mxu0 0
  %1387 = vmatprep.subr.bf16.mxu0 0
  %1388 = vmatpush1.bf16.xpose.msra.mxu0 0
  %1389 = vmatprep.subr.bf16.mxu0 0
  %1390 = vmatpush1.bf16.xpose.msra.mxu0 0
  %1391 = vmatprep.subr.bf16.mxu0 0
  %1392 = vmatpush1.bf16.xpose.msra.mxu0 0
  %1393 = vmatprep.subr.bf16.mxu0 0
  %1394 = vmatpush1.bf16.xpose.msra.mxu0 0
  %1395 = vmatprep.subr.bf16.mxu0 0
  %1396 = vmatpush1.bf16.xpose.msra.mxu0 0
  %1397 = vmatprep.subr.bf16.mxu0 0
  %1398 = vmatpush1.bf16.xpose.msra.mxu0 0
  %1399 = vmatprep.subr.bf16.mxu0 0
  %1400 = vmatpush1.bf16.xpose.msra.mxu0 0
  %1401 = vmatprep.subr.bf16.mxu0 0
  %1402 = vmatpush1.bf16.xpose.msra.mxu0 0
  %1403 = vmatprep.subr.bf16.mxu0 0
  %1404 = vmatpush1.bf16.xpose.msra.mxu0 0
  %1405 = vmatprep.subr.bf16.mxu0 0
  %1406 = vmatpush1.bf16.xpose.msra.mxu0 0
  %1407 = vmatprep.subr.bf16.mxu0 0
  %1408 = vmatpush1.bf16.xpose.msra.mxu0 0
  %1409 = vmatprep.subr.bf16.mxu0 0
  %1410 = vmatpush1.bf16.xpose.msra.mxu0 0
  %1411 = vmatprep.mubr.bf16.mxu0 0
  %1412 = vmatmul.mubr.bf16.gmra.mrb[0].mxu0 %v1377
  %v1413 = vpop.f32.mrb[0].mxu0
  %v1414 = vadd.f32 0.0, %v1413
  %v1415 = vpop.f32.mrb[0].mxu0
  %v1416 = vpop.f32.mrb[0].mxu0
  %v1417 = vpop.f32.mrb[0].mxu0
  %1418 = vdwg.mxu0
  %1420 = vset.pattern.permute.xlu0 0
  %1421 = vperm.xlu0 %1420, %v1369
  %v1422 = vpop.permute.xlu0 %1421
  %1425 = vset.pattern.permute.xlu0 0
  %1426 = vperm.xlu0 %1425, %v1372
  %v1427 = vpop.permute.xlu0 %1426
  %v1429 = vlaneseq
  %v1430 = vshrl.u32 %v1429, 7
  %v1431 = vsub.s32 0, %v1430
  %v1432 = vrot.slane %v1414, %v1431
  %v1433 = vadd.f32 %v1422, %v1432
  %v1434 = vadd.f32 %v1427, %v1432
  %v1435 = vmul.f32 %v1433, 0.2
  %v1436 = vmul.f32 %v1434, 0.2
  %v1437 = vmax.f32 %v1433, %v1435
  %v1438 = vmax.f32 %v1434, %v1436
  %vm1439 = vcmp.gt.bf16.partialorder %v90, 0
  %vm1440 = vcmp.gt.bf16.partialorder %v91, 0
  %v1441 = vsel %vm1439, 65537, 0
  %v1442 = vsel %vm1440, 65537, 0
  %v1443 = vunpack.c.l.b16 %v1441
  %v1444 = vunpack.c.l.b16 %v1442
  %vm1445 = vcmp.ne.s32.totalorder %v1443, 0
  %vm1446 = vcmp.ne.s32.totalorder %v1444, 0
  %v1447 = vsel %vm1445, %v1437, -1e+30
  %v1448 = vsel %vm1446, %v1438, -1e+30
  %v1449 = vsel %vm444, %v1447, -inf
  %1450 = vmax.xlane.f32.xlu0 %v1449
  %v1451 = vpop.xlane.xlu0 %1450
  %v1452 = vsel %vm444, %v1448, -inf
  %1453 = vmax.xlane.f32.xlu0 %v1452
  %v1454 = vpop.xlane.xlu0 %1453
  %v1455 = vsub.f32 %v1447, %v1451
  %v1456 = vsub.f32 %v1448, %v1454
  %v1457 = vmul.f32 %v1455, 1.442695
  %v1458 = vpow.pop %v1457
  %v1459 = vmul.f32 %v1456, 1.442695
  %v1460 = vpow.pop %v1459
  %v1461 = vsel %vm444, %v1458, 0.0
  %1462 = vadd.xlane.f32.xlu0 %v1461
  %v1463 = vpop.xlane.xlu0 %1462
  %v1464 = vsel %vm444, %v1460, 0.0
  %1465 = vadd.xlane.f32.xlu0 %v1464
  %v1466 = vpop.xlane.xlu0 %1465
  %v1467 = vrcp.pop %v1463
  %v1468 = vrcp.pop %v1466
  %v1469 = vmul.f32 %v1458, %v1467
  %v1470 = vmul.f32 %v1460, %v1468
  %v1471 = vpack.c.bf16 %v1470, %v1469
  %v1472 = vld [vmem:[%s19] sm:$0x1]
  %v1474 = vlaneseq
  %v1475 = vshrl.u32 %v1474, 7
  %v1476 = vsub.s32 0, %v1475
  %v1477 = vrot.slane %v1472, %v1476
  %v1480 = vsel %vm444, %v1471, 0
  %1482 = vmatprep.subr.bf16.mxu0 0
  %1483 = vmatpush1.bf16.msra.mxu0 %v1322
  %1484 = vmatprep.subr.bf16.mxu0 0
  %1485 = vmatpush1.bf16.msra.mxu0 0
  %1486 = vmatprep.subr.bf16.mxu0 0
  %1487 = vmatpush1.bf16.msra.mxu0 0
  %1488 = vmatprep.subr.bf16.mxu0 0
  %1489 = vmatpush1.bf16.msra.mxu0 0
  %1490 = vmatprep.subr.bf16.mxu0 0
  %1491 = vmatpush1.bf16.msra.mxu0 0
  %1492 = vmatprep.subr.bf16.mxu0 0
  %1493 = vmatpush1.bf16.msra.mxu0 0
  %1494 = vmatprep.subr.bf16.mxu0 0
  %1495 = vmatpush1.bf16.msra.mxu0 0
  %1496 = vmatprep.subr.bf16.mxu0 0
  %1497 = vmatpush1.bf16.msra.mxu0 0
  %1498 = vmatprep.subr.bf16.mxu0 0
  %1499 = vmatpush1.bf16.msra.mxu0 0
  %1500 = vmatprep.subr.bf16.mxu0 0
  %1501 = vmatpush1.bf16.msra.mxu0 0
  %1502 = vmatprep.subr.bf16.mxu0 0
  %1503 = vmatpush1.bf16.msra.mxu0 0
  %1504 = vmatprep.subr.bf16.mxu0 0
  %1505 = vmatpush1.bf16.msra.mxu0 0
  %1506 = vmatprep.subr.bf16.mxu0 0
  %1507 = vmatpush1.bf16.msra.mxu0 0
  %1508 = vmatprep.subr.bf16.mxu0 0
  %1509 = vmatpush1.bf16.msra.mxu0 0
  %1510 = vmatprep.subr.bf16.mxu0 0
  %1511 = vmatpush1.bf16.msra.mxu0 0
  %1512 = vmatprep.subr.bf16.mxu0 0
  %1513 = vmatpush1.bf16.msra.mxu0 0
  %1514 = vmatprep.mubr.bf16.mxu0 0
  %1515 = vmatmul.mubr.bf16.gmra.mrb[0].mxu0 %v1480
  %v1516 = vpop.f32.mrb[0].mxu0
  %v1517 = vadd.f32 %v1477, %v1516
  %v1518 = vpop.f32.mrb[0].mxu0
  %v1519 = vpop.f32.mrb[0].mxu0
  %v1520 = vadd.f32 %v1477, %v1519
  %v1521 = vpop.f32.mrb[0].mxu0
  %1522 = vdwg.mxu0
  %v1523 = vpack.c.bf16 %v1520, %v1517
  %v1524 = vld [vmem:[%s20] sm:$0xf]
  %v1525 = vld [vmem:[%s20 + $0x4] sm:$0xf]
  %v1526 = vld [vmem:[%s21] sm:$0x1]
  %v1528 = vlaneseq
  %v1529 = vshrl.u32 %v1528, 7
  %v1530 = vsub.s32 0, %v1529
  %v1531 = vrot.slane %v1526, %v1530
  %v1535 = vunpack.c.l.b16 %v1524
  %v1536 = vunpack.c.l.b16 %v1525
  %v1537 = vpack.c.b16 %v1536, %v1535
  %v1540 = vsel %vm444, %v1523, 0
  %1542 = vmatprep.subr.bf16.mxu0 0
  %1543 = vmatpush1.bf16.msra.mxu0 %v1537
  %1544 = vmatprep.subr.bf16.mxu0 0
  %1545 = vmatpush1.bf16.msra.mxu0 0
  %1546 = vmatprep.subr.bf16.mxu0 0
  %1547 = vmatpush1.bf16.msra.mxu0 0
  %1548 = vmatprep.subr.bf16.mxu0 0
  %1549 = vmatpush1.bf16.msra.mxu0 0
  %1550 = vmatprep.subr.bf16.mxu0 0
  %1551 = vmatpush1.bf16.msra.mxu0 0
  %1552 = vmatprep.subr.bf16.mxu0 0
  %1553 = vmatpush1.bf16.msra.mxu0 0
  %1554 = vmatprep.subr.bf16.mxu0 0
  %1555 = vmatpush1.bf16.msra.mxu0 0
  %1556 = vmatprep.subr.bf16.mxu0 0
  %1557 = vmatpush1.bf16.msra.mxu0 0
  %1558 = vmatprep.subr.bf16.mxu0 0
  %1559 = vmatpush1.bf16.msra.mxu0 0
  %1560 = vmatprep.subr.bf16.mxu0 0
  %1561 = vmatpush1.bf16.msra.mxu0 0
  %1562 = vmatprep.subr.bf16.mxu0 0
  %1563 = vmatpush1.bf16.msra.mxu0 0
  %1564 = vmatprep.subr.bf16.mxu0 0
  %1565 = vmatpush1.bf16.msra.mxu0 0
  %1566 = vmatprep.subr.bf16.mxu0 0
  %1567 = vmatpush1.bf16.msra.mxu0 0
  %1568 = vmatprep.subr.bf16.mxu0 0
  %1569 = vmatpush1.bf16.msra.mxu0 0
  %1570 = vmatprep.subr.bf16.mxu0 0
  %1571 = vmatpush1.bf16.msra.mxu0 0
  %1572 = vmatprep.subr.bf16.mxu0 0
  %1573 = vmatpush1.bf16.msra.mxu0 0
  %1574 = vmatprep.mubr.bf16.mxu0 0
  %1575 = vmatmul.mubr.bf16.gmra.mrb[0].mxu0 %v1540
  %v1576 = vpop.f32.mrb[0].mxu0
  %v1577 = vadd.f32 %v1531, %v1576
  %v1578 = vpop.f32.mrb[0].mxu0
  %v1579 = vpop.f32.mrb[0].mxu0
  %v1580 = vadd.f32 %v1531, %v1579
  %v1581 = vpop.f32.mrb[0].mxu0
  %1582 = vdwg.mxu0
  %vm1583 = vcmp.gt.f32.partialorder %v1577, 0.0
  %vm1584 = vcmp.gt.f32.partialorder %v1580, 0.0
  %v1585 = vmul.f32 %v1577, 1.442695
  %v1586 = vpow.pop %v1585
  %v1587 = vmul.f32 %v1580, 1.442695
  %v1588 = vpow.pop %v1587
  %v1589 = vsub.f32 %v1586, 1.0
  %v1590 = vsub.f32 %v1588, 1.0
  %v1591 = vsel %vm1583, %v1577, %v1589
  %v1592 = vsel %vm1584, %v1580, %v1590
  %v1593 = vpack.c.bf16 %v1592, %v1591
  %v1594 = vld [vmem:[%s22] sm:$0xf]
  %v1595 = vld [vmem:[%s22 + $0x4] sm:$0xf]
  %v1596 = vld [vmem:[%s22 + $0x8] sm:$0xf]
  %v1597 = vld [vmem:[%s22 + $0xc] sm:$0xf]
  %v1598 = vld [vmem:[%s23] sm:$0x1]
  %v1600 = vlaneseq
  %v1601 = vshrl.u32 %v1600, 7
  %v1602 = vsub.s32 0, %v1601
  %v1603 = vrot.slane %v1598, %v1602
  %v1609 = vunpack.c.l.b16 %v1594
  %v1610 = vunpack.c.l.b16 %v1595
  %v1611 = vunpack.c.l.b16 %v1596
  %v1612 = vunpack.c.l.b16 %v1597
  %v1613 = vpack.c.b16 %v1610, %v1609
  %v1614 = vpack.c.b16 %v1612, %v1611
  %v1618 = vsel %vm663, %v1593, 0
  %1620 = vmatprep.subr.bf16.mxu0 0
  %1621 = vmatpush1.bf16.msra.mxu0 %v1613
  %1622 = vmatprep.subr.bf16.mxu0 0
  %1623 = vmatpush1.bf16.msra.mxu0 %v1614
  %1624 = vmatprep.subr.bf16.mxu0 0
  %1625 = vmatpush1.bf16.msra.mxu0 0
  %1626 = vmatprep.subr.bf16.mxu0 0
  %1627 = vmatpush1.bf16.msra.mxu0 0
  %1628 = vmatprep.subr.bf16.mxu0 0
  %1629 = vmatpush1.bf16.msra.mxu0 0
  %1630 = vmatprep.subr.bf16.mxu0 0
  %1631 = vmatpush1.bf16.msra.mxu0 0
  %1632 = vmatprep.subr.bf16.mxu0 0
  %1633 = vmatpush1.bf16.msra.mxu0 0
  %1634 = vmatprep.subr.bf16.mxu0 0
  %1635 = vmatpush1.bf16.msra.mxu0 0
  %1636 = vmatprep.subr.bf16.mxu0 0
  %1637 = vmatpush1.bf16.msra.mxu0 0
  %1638 = vmatprep.subr.bf16.mxu0 0
  %1639 = vmatpush1.bf16.msra.mxu0 0
  %1640 = vmatprep.subr.bf16.mxu0 0
  %1641 = vmatpush1.bf16.msra.mxu0 0
  %1642 = vmatprep.subr.bf16.mxu0 0
  %1643 = vmatpush1.bf16.msra.mxu0 0
  %1644 = vmatprep.subr.bf16.mxu0 0
  %1645 = vmatpush1.bf16.msra.mxu0 0
  %1646 = vmatprep.subr.bf16.mxu0 0
  %1647 = vmatpush1.bf16.msra.mxu0 0
  %1648 = vmatprep.subr.bf16.mxu0 0
  %1649 = vmatpush1.bf16.msra.mxu0 0
  %1650 = vmatprep.subr.bf16.mxu0 0
  %1651 = vmatpush1.bf16.msra.mxu0 0
  %1652 = vmatprep.mubr.bf16.mxu0 0
  %1653 = vmatmul.mubr.bf16.gmra.mrb[0].mxu0 %v1618
  %v1654 = vpop.f32.mrb[0].mxu0
  %v1655 = vadd.f32 %v1603, %v1654
  %v1656 = vpop.f32.mrb[0].mxu0
  %v1657 = vpop.f32.mrb[0].mxu0
  %v1658 = vadd.f32 %v1603, %v1657
  %v1659 = vpop.f32.mrb[0].mxu0
  %1660 = vdwg.mxu0
  %vm1661 = vcmp.gt.f32.partialorder %v1655, 0.0
  %vm1662 = vcmp.gt.f32.partialorder %v1658, 0.0
  %v1663 = vmul.f32 %v1655, 1.442695
  %v1664 = vpow.pop %v1663
  %v1665 = vmul.f32 %v1658, 1.442695
  %v1666 = vpow.pop %v1665
  %v1667 = vsub.f32 %v1664, 1.0
  %v1668 = vsub.f32 %v1666, 1.0
  %v1669 = vsel %vm1661, %v1655, %v1667
  %v1670 = vsel %vm1662, %v1658, %v1668
  %v1671 = vpack.c.bf16 %v1670, %v1669
  %v1672 = vld [vmem:[%s24] sm:$0xf]
  %v1673 = vld [vmem:[%s24 + $0x4] sm:$0xf]
  %v1674 = vld [vmem:[#allocation2] sm:$0x1]
  %v1676 = vlaneseq
  %v1677 = vshrl.u32 %v1676, 7
  %v1678 = vsub.s32 0, %v1677
  %v1679 = vrot.slane %v1674, %v1678
  %v1683 = vunpack.c.l.b16 %v1672
  %v1684 = vunpack.c.l.b16 %v1673
  %v1685 = vpack.c.b16 %v1684, %v1683
  %v1688 = vsel %vm444, %v1671, 0
  %1690 = vmatprep.subr.bf16.mxu0 0
  %1691 = vmatpush1.bf16.msra.mxu0 %v1685
  %1692 = vmatprep.subr.bf16.mxu0 0
  %1693 = vmatpush1.bf16.msra.mxu0 0
  %1694 = vmatprep.subr.bf16.mxu0 0
  %1695 = vmatpush1.bf16.msra.mxu0 0
  %1696 = vmatprep.subr.bf16.mxu0 0
  %1697 = vmatpush1.bf16.msra.mxu0 0
  %1698 = vmatprep.subr.bf16.mxu0 0
  %1699 = vmatpush1.bf16.msra.mxu0 0
  %1700 = vmatprep.subr.bf16.mxu0 0
  %1701 = vmatpush1.bf16.msra.mxu0 0
  %1702 = vmatprep.subr.bf16.mxu0 0
  %1703 = vmatpush1.bf16.msra.mxu0 0
  %1704 = vmatprep.subr.bf16.mxu0 0
  %1705 = vmatpush1.bf16.msra.mxu0 0
  %1706 = vmatprep.subr.bf16.mxu0 0
  %1707 = vmatpush1.bf16.msra.mxu0 0
  %1708 = vmatprep.subr.bf16.mxu0 0
  %1709 = vmatpush1.bf16.msra.mxu0 0
  %1710 = vmatprep.subr.bf16.mxu0 0
  %1711 = vmatpush1.bf16.msra.mxu0 0
  %1712 = vmatprep.subr.bf16.mxu0 0
  %1713 = vmatpush1.bf16.msra.mxu0 0
  %1714 = vmatprep.subr.bf16.mxu0 0
  %1715 = vmatpush1.bf16.msra.mxu0 0
  %1716 = vmatprep.subr.bf16.mxu0 0
  %1717 = vmatpush1.bf16.msra.mxu0 0
  %1718 = vmatprep.subr.bf16.mxu0 0
  %1719 = vmatpush1.bf16.msra.mxu0 0
  %1720 = vmatprep.subr.bf16.mxu0 0
  %1721 = vmatpush1.bf16.msra.mxu0 0
  %1722 = vmatprep.mubr.bf16.mxu0 0
  %1723 = vmatmul.mubr.bf16.gmra.mrb[0].mxu0 %v1688
  %v1724 = vpop.f32.mrb[0].mxu0
  %v1725 = vadd.f32 %v1679, %v1724
  %v1726 = vpop.f32.mrb[0].mxu0
  %v1727 = vpop.f32.mrb[0].mxu0
  %v1728 = vadd.f32 %v1679, %v1727
  %v1729 = vpop.f32.mrb[0].mxu0
  %1730 = vdwg.mxu0
  %v1731 = vsub.f32 0.0, %v1725
  %v1732 = vsub.f32 0.0, %v1728
  %v1733 = vmul.f32 %v1731, 1.442695
  %v1734 = vpow.pop %v1733
  %v1735 = vmul.f32 %v1732, 1.442695
  %v1736 = vpow.pop %v1735
  %v1737 = vadd.f32 %v1734, 1.0
  %v1738 = vadd.f32 %v1736, 1.0
  %v1739 = vrcp.pop %v1737
  %v1740 = vmul.f32 1.0, %v1739
  %v1741 = vrcp.pop %v1738
  %v1742 = vmul.f32 1.0, %v1741
  %vm1743 = vcmask 7168
  %1744 = vst.msk [vmem:[%s26] sm:$0xff] %vm1743, %v1740
  %1745 = vst.msk [vmem:[%s26 + $0x8] sm:$0xff] %vm1743, %v1742
  // Predicated region
  $region106: #{tpu_custom_call.1} parent=0 // pred_check
    _
  $region107: #{tpu_custom_call.1} parent=0 // pred_check_branch
    %1747 = sbr.rel (0) target = $region109
  $region108: #{tpu_custom_call.1} parent=0 // pred_region
    _
  $region109: #{tpu_custom_call.1} parent=0 // pred_fallthru
    _
  // Predicated region
  $region110: #{tpu_custom_call.1} parent=0 // pred_check
    _
  $region111: #{tpu_custom_call.1} parent=0 // pred_check_branch
    %1749 = sbr.rel (0) target = $region113
  $region112: #{tpu_custom_call.1} parent=0 // pred_region
    _
  $region113: #{tpu_custom_call.1} parent=0 // pred_fallthru
    _

</llo_original>
